<compile_context>
chip_gen: v7x
topology: tpu7x:2x2x1
jax: 0.10.0
libtpu: 0.0.40
codegen_flags: <defaults>
</compile_context>

<pallas_src>
import functools

import jax
import jax.numpy as jnp
from jax.experimental import pallas as pl
from jax.experimental.pallas import tpu as pltpu

BN_EPS = 1e-5


# ---------------------------------------------------------------------------
# Fused BN(eval) + ReLU + 3x3 conv (pad=1) + channel-concat kernel.
#   x_ref     : (C, HW)          one image, channels on sublanes, spatial on lanes
#   scale_ref : (C, 1)           gamma * rsqrt(var + eps)
#   shift_ref : (C, 1)           beta - mean * scale
#   w_ref     : (9, G, C)        conv weight, tap-major ((kh*3+kw), out, in)
#   o_ref     : (C + G, HW)      concat([x, conv_out]) along channel (sublane) dim
#   hp_ref    : (C, HW + 2*PAD)  zero-padded flat activation scratch (f32)
# ---------------------------------------------------------------------------
def _fused_bn_relu_conv3x3_cat_kernel(x_ref, scale_ref, shift_ref, w_ref,
                                      o_ref, hp_ref, *, width):
    C, HW = x_ref.shape
    G = w_ref.shape[1]
    PAD = (hp_ref.shape[1] - HW) // 2
    W = width

    x = x_ref[...]
    h = jnp.maximum(x.astype(jnp.float32) * scale_ref[...] + shift_ref[...], 0.0)

    # Zero halos + write the activation into the padded flat scratch.  Reads at
    # flat offsets outside [0, HW) (i.e. rows above/below the image) then land
    # in the zero halo, implementing the conv's zero padding in H for free.
    hp_ref[:, :PAD] = jnp.zeros((C, PAD), jnp.float32)
    hp_ref[:, PAD + HW:PAD + HW + PAD] = jnp.zeros((C, PAD), jnp.float32)
    hp_ref[:, PAD:PAD + HW] = h

    # Lane index -> image column, for masking wrap-around at the W boundary.
    col = jax.lax.broadcasted_iota(jnp.int32, (1, HW), 1) % W

    acc = jnp.zeros((G, HW), jnp.float32)
    for j, dw in enumerate((-1, 0, 1)):          # kw = j
        part = jnp.zeros((G, HW), jnp.float32)
        for i, dh in enumerate((-1, 0, 1)):      # kh = i
            s = dh * W + dw
            window = hp_ref[:, PAD + s:PAD + s + HW]          # (C, HW) f32
            wt = w_ref[i * 3 + j]                             # (G, C)
            part = part + jnp.dot(wt, window,
                                  preferred_element_type=jnp.float32)
        if dw == -1:
            part = jnp.where(col >= 1, part, 0.0)
        elif dw == 1:
            part = jnp.where(col <= W - 2, part, 0.0)
        acc = acc + part

    o_ref[:C, :] = x                              # concat: original input first
    o_ref[C:, :] = acc.astype(o_ref.dtype)        # then the conv output


# ---------------------------------------------------------------------------
# Wrapper
# ---------------------------------------------------------------------------
@jax.jit
def single_layer_forward(x, gamma, beta, running_mean, running_var, conv_w):
    N, C, H, W = x.shape
    G = conv_w.shape[0]
    HW = H * W
    PAD = ((W + 1 + 127) // 128) * 128            # lane-aligned halo, >= W+1
    dtype = x.dtype

    # Fold BN into per-channel scale/shift (eval mode).
    scale = (gamma * jax.lax.rsqrt(running_var + BN_EPS)).astype(jnp.float32)
    shift = (beta - running_mean * scale).astype(jnp.float32)
    scale2 = scale.reshape(C, 1)
    shift2 = shift.reshape(C, 1)

    # (G, C, 3, 3) -> (9, G, C); tiny, negligible cost.
    w_taps = jnp.transpose(conv_w, (2, 3, 0, 1)).reshape(9, G, C).astype(jnp.float32)

    # Free reshape (contiguous): NCHW viewed as (N, C, H*W).  No transposes.
    x_flat = x.reshape(N, C, HW)

    kernel = functools.partial(_fused_bn_relu_conv3x3_cat_kernel, width=W)

    out_flat = pl.pallas_call(
        kernel,
        out_shape=jax.ShapeDtypeStruct((N, C + G, HW), dtype),
        grid_spec=pltpu.PrefetchScalarGridSpec(
            num_scalar_prefetch=0,
            grid=(N,),
            in_specs=[
                pl.BlockSpec((None, C, HW), lambda n: (n, 0, 0)),
                pl.BlockSpec((C, 1), lambda n: (0, 0)),
                pl.BlockSpec((C, 1), lambda n: (0, 0)),
                pl.BlockSpec((9, G, C), lambda n: (0, 0, 0)),
            ],
            out_specs=pl.BlockSpec((None, C + G, HW), lambda n: (n, 0, 0)),
            scratch_shapes=[pltpu.VMEM((C, HW + 2 * PAD), jnp.float32)],
        ),
        compiler_params=pltpu.CompilerParams(
            dimension_semantics=("parallel",)),
    )(x_flat, scale2, shift2, w_taps)

    return out_flat.reshape(N, C + G, H, W)


# ---------------------------------------------------------------------------
# Pure-JAX reference (eval-mode BN) for correctness checking
# ---------------------------------------------------------------------------
def reference(x, gamma, beta, mean, var, conv_w):
    s = (gamma * jax.lax.rsqrt(var + BN_EPS))[None, :, None, None]
    h = (x - mean[None, :, None, None]) * s + beta[None, :, None, None]
    h = jnp.maximum(h, 0.0)
    y = jax.lax.conv_general_dilated(
        h, conv_w, window_strides=(1, 1), padding=((1, 1), (1, 1)),
        dimension_numbers=("NCHW", "OIHW", "NCHW"),
        precision=jax.lax.Precision.HIGHEST)
    return jnp.concatenate([x, y], axis=1)


if __name__ == "__main__":
    # Small shapes consistent with SingleLayer: nChannels=16, growthRate=12.
    N, C, G = 2, 16, 12
    H = W = 16

    key = jax.random.PRNGKey(0)
    kx, kg, kb, km, kv, kw = jax.random.split(key, 6)

    x = jax.random.normal(kx, (N, C, H, W), dtype=jnp.float32)

    gamma = jax.random.uniform(kg, (C,), minval=0.5, maxval=1.5,
                               dtype=jnp.float32)
    beta = 0.1 * jax.random.normal(kb, (C,), dtype=jnp.float32)
    running_mean = 0.1 * jax.random.normal(km, (C,), dtype=jnp.float32)
    running_var = jax.random.uniform(kv, (C,), minval=0.5, maxval=1.5,
                                     dtype=jnp.float32)
    # Conv2d weight (G, C, 3, 3), no bias.
    conv_w = (jax.random.normal(kw, (G, C, 3, 3), dtype=jnp.float32)
              / jnp.sqrt(jnp.float32(C * 9)))

    out = single_layer_forward(x, gamma, beta, running_mean, running_var,
                               conv_w)
    out = jax.block_until_ready(out)

    ref = reference(x, gamma, beta, running_mean, running_var, conv_w)

    assert out.shape == (N, C + G, H, W), out.shape
    assert jnp.allclose(out, ref, rtol=1e-3, atol=1e-3), \
        float(jnp.max(jnp.abs(out - ref)))

    print("KERNEL_OK")
</pallas_src>

<mosaic_0001>
module attributes {stable_mosaic.version = 11 : i64} {
  func.func @_fused_bn_relu_conv3x3_cat_kernel(%arg0: i32, %arg1: memref<1x16x256xf32, #tpu.memory_space<vmem>>, %arg2: memref<16x1xf32, #tpu.memory_space<vmem>>, %arg3: memref<16x1xf32, #tpu.memory_space<vmem>>, %arg4: memref<9x12x16xf32, #tpu.memory_space<vmem>>, %arg5: memref<1x28x256xf32, #tpu.memory_space<vmem>>, %arg6: memref<16x512xf32, #tpu.memory_space<vmem>>) attributes {dimension_semantics = [#tpu.dimension_semantics<parallel>], iteration_bounds = array<i64: 2>, scalar_prefetch = 0 : i64, scratch_operands = 1 : i64, tpu.core_type = #tpu.core_type<tc>, window_params = [{transform_indices = @transform_0, window_bounds = array<i64: 1, 16, 256>}, {pipeline_mode = #tpu.pipeline_mode<synchronous>, transform_indices = @transform_1, window_bounds = array<i64: 16, 1>}, {pipeline_mode = #tpu.pipeline_mode<synchronous>, transform_indices = @transform_2, window_bounds = array<i64: 16, 1>}, {pipeline_mode = #tpu.pipeline_mode<synchronous>, transform_indices = @transform_3, window_bounds = array<i64: 9, 12, 16>}, {transform_indices = @transform_4, window_bounds = array<i64: 1, 28, 256>}]} {
    %c0 = arith.constant 0 : index
    %c0_0 = arith.constant 0 : index
    %c0_1 = arith.constant 0 : index
    %0 = vector.load %arg1[%c0, %c0_0, %c0_1] : memref<1x16x256xf32, #tpu.memory_space<vmem>>, vector<1x16x256xf32>
    %1 = vector.shape_cast %0 : vector<1x16x256xf32> to vector<16x256xf32>
    %c0_2 = arith.constant 0 : index
    %c0_3 = arith.constant 0 : index
    %2 = vector.load %arg2[%c0_2, %c0_3] : memref<16x1xf32, #tpu.memory_space<vmem>>, vector<16x1xf32>
    %3 = vector.broadcast %2 : vector<16x1xf32> to vector<16x256xf32>
    %4 = arith.mulf %1, %3 : vector<16x256xf32>
    %c0_4 = arith.constant 0 : index
    %c0_5 = arith.constant 0 : index
    %5 = vector.load %arg3[%c0_4, %c0_5] : memref<16x1xf32, #tpu.memory_space<vmem>>, vector<16x1xf32>
    %6 = vector.broadcast %5 : vector<16x1xf32> to vector<16x256xf32>
    %7 = arith.addf %4, %6 : vector<16x256xf32>
    %cst = arith.constant 0.000000e+00 : f32
    %8 = vector.broadcast %cst : f32 to vector<16x256xf32>
    %9 = arith.maximumf %7, %8 : vector<16x256xf32>
    %cst_6 = arith.constant 0.000000e+00 : f32
    %10 = vector.broadcast %cst_6 : f32 to vector<16x128xf32>
    %c0_7 = arith.constant 0 : index
    %c0_8 = arith.constant 0 : index
    %11 = vector.load %arg6[%c0_7, %c0_8] : memref<16x512xf32, #tpu.memory_space<vmem>>, vector<16x128xf32>
    tpu.vector_store %arg6[%c0_7, %c0_8], %10 {strides = array<i32>} : memref<16x512xf32, #tpu.memory_space<vmem>>, vector<16x128xf32>,
    %cst_9 = arith.constant 0.000000e+00 : f32
    %12 = vector.broadcast %cst_9 : f32 to vector<16x128xf32>
    %c0_10 = arith.constant 0 : index
    %c384 = arith.constant 384 : index
    %13 = vector.load %arg6[%c0_10, %c384] : memref<16x512xf32, #tpu.memory_space<vmem>>, vector<16x128xf32>
    tpu.vector_store %arg6[%c0_10, %c384], %12 {strides = array<i32>} : memref<16x512xf32, #tpu.memory_space<vmem>>, vector<16x128xf32>,
    %c0_11 = arith.constant 0 : index
    %c128 = arith.constant 128 : index
    %14 = vector.load %arg6[%c0_11, %c128] : memref<16x512xf32, #tpu.memory_space<vmem>>, vector<16x256xf32>
    tpu.vector_store %arg6[%c0_11, %c128], %9 {strides = array<i32>} : memref<16x512xf32, #tpu.memory_space<vmem>>, vector<16x256xf32>,
    %15 = tpu.iota {dimensions = array<i32: 1>} : vector<1x256xi32>
    %c16_i32 = arith.constant 16 : i32
    %c0_i32 = arith.constant 0 : i32
    %16 = arith.cmpi eq, %c16_i32, %c0_i32 : i32
    %c1_i32 = arith.constant 1 : i32
    %17 = arith.select %16, %c1_i32, %c16_i32 : i32
    %18 = vector.broadcast %17 : i32 to vector<1x256xi32>
    %19 = arith.remsi %15, %18 : vector<1x256xi32>
    %c0_i32_12 = arith.constant 0 : i32
    %20 = vector.broadcast %c0_i32_12 : i32 to vector<1x256xi32>
    %21 = arith.cmpi ne, %19, %20 : vector<1x256xi32>
    %c0_i32_13 = arith.constant 0 : i32
    %22 = vector.broadcast %c0_i32_13 : i32 to vector<1x256xi32>
    %23 = arith.cmpi slt, %19, %22 : vector<1x256xi32>
    %c0_i32_14 = arith.constant 0 : i32
    %24 = arith.cmpi slt, %17, %c0_i32_14 : i32
    %25 = vector.broadcast %24 : i1 to vector<1x256xi1>
    %26 = vector.broadcast %25 : vector<1x256xi1> to vector<1x256xi1>
    %27 = arith.xori %23, %26 : vector<1x256xi1>
    %28 = arith.andi %27, %21 : vector<1x256xi1>
    %29 = vector.broadcast %17 : i32 to vector<1x256xi32>
    %30 = arith.addi %19, %29 : vector<1x256xi32>
    %31 = arith.select %28, %30, %19 : vector<1x256xi1>, vector<1x256xi32>
    %cst_15 = arith.constant 0.000000e+00 : f32
    %32 = vector.broadcast %cst_15 : f32 to vector<12x256xf32>
    %cst_16 = arith.constant 0.000000e+00 : f32
    %33 = vector.broadcast %cst_16 : f32 to vector<12x256xf32>
    %c0_17 = arith.constant 0 : index
    %c111 = arith.constant 111 : index
    %34 = vector.load %arg6[%c0_17, %c111] : memref<16x512xf32, #tpu.memory_space<vmem>>, vector<16x256xf32>
    %c0_18 = arith.constant 0 : index
    %c0_19 = arith.constant 0 : index
    %c0_20 = arith.constant 0 : index
    %35 = vector.load %arg4[%c0_18, %c0_19, %c0_20] : memref<9x12x16xf32, #tpu.memory_space<vmem>>, vector<1x12x16xf32>
    %36 = vector.shape_cast %35 : vector<1x12x16xf32> to vector<12x16xf32>
    %cst_21 = arith.constant dense<0.000000e+00> : vector<12x256xf32>
    %37 = tpu.matmul %36, %34, %cst_21 {dimension_numbers = #tpu.dot_dimension_numbers<[1], [0], [0], [1], [0, 0, 1, 1], [], []>} : vector<12x16xf32>, vector<16x256xf32>, vector<12x256xf32> -> vector<12x256xf32>
    %38 = arith.addf %33, %37 : vector<12x256xf32>
    %c0_22 = arith.constant 0 : index
    %c127 = arith.constant 127 : index
    %39 = vector.load %arg6[%c0_22, %c127] : memref<16x512xf32, #tpu.memory_space<vmem>>, vector<16x256xf32>
    %c3 = arith.constant 3 : index
    %c0_23 = arith.constant 0 : index
    %c0_24 = arith.constant 0 : index
    %40 = vector.load %arg4[%c3, %c0_23, %c0_24] : memref<9x12x16xf32, #tpu.memory_space<vmem>>, vector<1x12x16xf32>
    %41 = vector.shape_cast %40 : vector<1x12x16xf32> to vector<12x16xf32>
    %cst_25 = arith.constant dense<0.000000e+00> : vector<12x256xf32>
    %42 = tpu.matmul %41, %39, %cst_25 {dimension_numbers = #tpu.dot_dimension_numbers<[1], [0], [0], [1], [0, 0, 1, 1], [], []>} : vector<12x16xf32>, vector<16x256xf32>, vector<12x256xf32> -> vector<12x256xf32>
    %43 = arith.addf %38, %42 : vector<12x256xf32>
    %c0_26 = arith.constant 0 : index
    %c143 = arith.constant 143 : index
    %44 = vector.load %arg6[%c0_26, %c143] : memref<16x512xf32, #tpu.memory_space<vmem>>, vector<16x256xf32>
    %c6 = arith.constant 6 : index
    %c0_27 = arith.constant 0 : index
    %c0_28 = arith.constant 0 : index
    %45 = vector.load %arg4[%c6, %c0_27, %c0_28] : memref<9x12x16xf32, #tpu.memory_space<vmem>>, vector<1x12x16xf32>
    %46 = vector.shape_cast %45 : vector<1x12x16xf32> to vector<12x16xf32>
    %cst_29 = arith.constant dense<0.000000e+00> : vector<12x256xf32>
    %47 = tpu.matmul %46, %44, %cst_29 {dimension_numbers = #tpu.dot_dimension_numbers<[1], [0], [0], [1], [0, 0, 1, 1], [], []>} : vector<12x16xf32>, vector<16x256xf32>, vector<12x256xf32> -> vector<12x256xf32>
    %48 = arith.addf %43, %47 : vector<12x256xf32>
    %c1_i32_30 = arith.constant 1 : i32
    %49 = vector.broadcast %c1_i32_30 : i32 to vector<1x256xi32>
    %50 = arith.cmpi sge, %31, %49 : vector<1x256xi32>
    %cst_31 = arith.constant 0.000000e+00 : f32
    %51 = vector.shape_cast %50 : vector<1x256xi1> to vector<1x256xi1>
    %52 = vector.broadcast %51 : vector<1x256xi1> to vector<12x256xi1>
    %53 = vector.broadcast %cst_31 : f32 to vector<12x256xf32>
    %54 = arith.select %52, %48, %53 : vector<12x256xi1>, vector<12x256xf32>
    %55 = arith.addf %32, %54 : vector<12x256xf32>
    %cst_32 = arith.constant 0.000000e+00 : f32
    %56 = vector.broadcast %cst_32 : f32 to vector<12x256xf32>
    %c0_33 = arith.constant 0 : index
    %c112 = arith.constant 112 : index
    %57 = vector.load %arg6[%c0_33, %c112] : memref<16x512xf32, #tpu.memory_space<vmem>>, vector<16x256xf32>
    %c1 = arith.constant 1 : index
    %c0_34 = arith.constant 0 : index
    %c0_35 = arith.constant 0 : index
    %58 = vector.load %arg4[%c1, %c0_34, %c0_35] : memref<9x12x16xf32, #tpu.memory_space<vmem>>, vector<1x12x16xf32>
    %59 = vector.shape_cast %58 : vector<1x12x16xf32> to vector<12x16xf32>
    %cst_36 = arith.constant dense<0.000000e+00> : vector<12x256xf32>
    %60 = tpu.matmul %59, %57, %cst_36 {dimension_numbers = #tpu.dot_dimension_numbers<[1], [0], [0], [1], [0, 0, 1, 1], [], []>} : vector<12x16xf32>, vector<16x256xf32>, vector<12x256xf32> -> vector<12x256xf32>
    %61 = arith.addf %56, %60 : vector<12x256xf32>
    %c0_37 = arith.constant 0 : index
    %c128_38 = arith.constant 128 : index
    %62 = vector.load %arg6[%c0_37, %c128_38] : memref<16x512xf32, #tpu.memory_space<vmem>>, vector<16x256xf32>
    %c4 = arith.constant 4 : index
    %c0_39 = arith.constant 0 : index
    %c0_40 = arith.constant 0 : index
    %63 = vector.load %arg4[%c4, %c0_39, %c0_40] : memref<9x12x16xf32, #tpu.memory_space<vmem>>, vector<1x12x16xf32>
    %64 = vector.shape_cast %63 : vector<1x12x16xf32> to vector<12x16xf32>
    %cst_41 = arith.constant dense<0.000000e+00> : vector<12x256xf32>
    %65 = tpu.matmul %64, %62, %cst_41 {dimension_numbers = #tpu.dot_dimension_numbers<[1], [0], [0], [1], [0, 0, 1, 1], [], []>} : vector<12x16xf32>, vector<16x256xf32>, vector<12x256xf32> -> vector<12x256xf32>
    %66 = arith.addf %61, %65 : vector<12x256xf32>
    %c0_42 = arith.constant 0 : index
    %c144 = arith.constant 144 : index
    %67 = vector.load %arg6[%c0_42, %c144] : memref<16x512xf32, #tpu.memory_space<vmem>>, vector<16x256xf32>
    %c7 = arith.constant 7 : index
    %c0_43 = arith.constant 0 : index
    %c0_44 = arith.constant 0 : index
    %68 = vector.load %arg4[%c7, %c0_43, %c0_44] : memref<9x12x16xf32, #tpu.memory_space<vmem>>, vector<1x12x16xf32>
    %69 = vector.shape_cast %68 : vector<1x12x16xf32> to vector<12x16xf32>
    %cst_45 = arith.constant dense<0.000000e+00> : vector<12x256xf32>
    %70 = tpu.matmul %69, %67, %cst_45 {dimension_numbers = #tpu.dot_dimension_numbers<[1], [0], [0], [1], [0, 0, 1, 1], [], []>} : vector<12x16xf32>, vector<16x256xf32>, vector<12x256xf32> -> vector<12x256xf32>
    %71 = arith.addf %66, %70 : vector<12x256xf32>
    %72 = arith.addf %55, %71 : vector<12x256xf32>
    %cst_46 = arith.constant 0.000000e+00 : f32
    %73 = vector.broadcast %cst_46 : f32 to vector<12x256xf32>
    %c0_47 = arith.constant 0 : index
    %c113 = arith.constant 113 : index
    %74 = vector.load %arg6[%c0_47, %c113] : memref<16x512xf32, #tpu.memory_space<vmem>>, vector<16x256xf32>
    %c2 = arith.constant 2 : index
    %c0_48 = arith.constant 0 : index
    %c0_49 = arith.constant 0 : index
    %75 = vector.load %arg4[%c2, %c0_48, %c0_49] : memref<9x12x16xf32, #tpu.memory_space<vmem>>, vector<1x12x16xf32>
    %76 = vector.shape_cast %75 : vector<1x12x16xf32> to vector<12x16xf32>
    %cst_50 = arith.constant dense<0.000000e+00> : vector<12x256xf32>
    %77 = tpu.matmul %76, %74, %cst_50 {dimension_numbers = #tpu.dot_dimension_numbers<[1], [0], [0], [1], [0, 0, 1, 1], [], []>} : vector<12x16xf32>, vector<16x256xf32>, vector<12x256xf32> -> vector<12x256xf32>
    %78 = arith.addf %73, %77 : vector<12x256xf32>
    %c0_51 = arith.constant 0 : index
    %c129 = arith.constant 129 : index
    %79 = vector.load %arg6[%c0_51, %c129] : memref<16x512xf32, #tpu.memory_space<vmem>>, vector<16x256xf32>
    %c5 = arith.constant 5 : index
    %c0_52 = arith.constant 0 : index
    %c0_53 = arith.constant 0 : index
    %80 = vector.load %arg4[%c5, %c0_52, %c0_53] : memref<9x12x16xf32, #tpu.memory_space<vmem>>, vector<1x12x16xf32>
    %81 = vector.shape_cast %80 : vector<1x12x16xf32> to vector<12x16xf32>
    %cst_54 = arith.constant dense<0.000000e+00> : vector<12x256xf32>
    %82 = tpu.matmul %81, %79, %cst_54 {dimension_numbers = #tpu.dot_dimension_numbers<[1], [0], [0], [1], [0, 0, 1, 1], [], []>} : vector<12x16xf32>, vector<16x256xf32>, vector<12x256xf32> -> vector<12x256xf32>
    %83 = arith.addf %78, %82 : vector<12x256xf32>
    %c0_55 = arith.constant 0 : index
    %c145 = arith.constant 145 : index
    %84 = vector.load %arg6[%c0_55, %c145] : memref<16x512xf32, #tpu.memory_space<vmem>>, vector<16x256xf32>
    %c8 = arith.constant 8 : index
    %c0_56 = arith.constant 0 : index
    %c0_57 = arith.constant 0 : index
    %85 = vector.load %arg4[%c8, %c0_56, %c0_57] : memref<9x12x16xf32, #tpu.memory_space<vmem>>, vector<1x12x16xf32>
    %86 = vector.shape_cast %85 : vector<1x12x16xf32> to vector<12x16xf32>
    %cst_58 = arith.constant dense<0.000000e+00> : vector<12x256xf32>
    %87 = tpu.matmul %86, %84, %cst_58 {dimension_numbers = #tpu.dot_dimension_numbers<[1], [0], [0], [1], [0, 0, 1, 1], [], []>} : vector<12x16xf32>, vector<16x256xf32>, vector<12x256xf32> -> vector<12x256xf32>
    %88 = arith.addf %83, %87 : vector<12x256xf32>
    %c14_i32 = arith.constant 14 : i32
    %89 = vector.broadcast %c14_i32 : i32 to vector<1x256xi32>
    %90 = arith.cmpi sle, %31, %89 : vector<1x256xi32>
    %cst_59 = arith.constant 0.000000e+00 : f32
    %91 = vector.shape_cast %90 : vector<1x256xi1> to vector<1x256xi1>
    %92 = vector.broadcast %91 : vector<1x256xi1> to vector<12x256xi1>
    %93 = vector.broadcast %cst_59 : f32 to vector<12x256xf32>
    %94 = arith.select %92, %88, %93 : vector<12x256xi1>, vector<12x256xf32>
    %95 = arith.addf %72, %94 : vector<12x256xf32>
    %c0_60 = arith.constant 0 : index
    %c0_61 = arith.constant 0 : index
    %c0_62 = arith.constant 0 : index
    %96 = vector.load %arg5[%c0_60, %c0_61, %c0_62] : memref<1x28x256xf32, #tpu.memory_space<vmem>>, vector<1x16x256xf32>
    %97 = vector.shape_cast %96 : vector<1x16x256xf32> to vector<16x256xf32>
    %98 = vector.shape_cast %1 : vector<16x256xf32> to vector<1x16x256xf32>
    tpu.vector_store %arg5[%c0_60, %c0_61, %c0_62], %98 {strides = array<i32>} : memref<1x28x256xf32, #tpu.memory_space<vmem>>, vector<1x16x256xf32>,
    %c0_63 = arith.constant 0 : index
    %c16 = arith.constant 16 : index
    %c0_64 = arith.constant 0 : index
    %99 = vector.load %arg5[%c0_63, %c16, %c0_64] : memref<1x28x256xf32, #tpu.memory_space<vmem>>, vector<1x12x256xf32>
    %100 = vector.shape_cast %99 : vector<1x12x256xf32> to vector<12x256xf32>
    %101 = vector.shape_cast %95 : vector<12x256xf32> to vector<1x12x256xf32>
    tpu.vector_store %arg5[%c0_63, %c16, %c0_64], %101 {strides = array<i32>} : memref<1x28x256xf32, #tpu.memory_space<vmem>>, vector<1x12x256xf32>,
    return
  }
  func.func @transform_0(%arg0: i32) -> (i32, i32, i32) {
    %c0_i32 = arith.constant 0 : i32
    %c0_i32_0 = arith.constant 0 : i32
    %c0_i32_1 = arith.constant 0 : i32
    return %arg0, %c0_i32, %c0_i32_0 : i32, i32, i32
  }
  func.func @transform_1(%arg0: i32) -> (i32, i32) {
    %c0_i32 = arith.constant 0 : i32
    %c0_i32_0 = arith.constant 0 : i32
    %c0_i32_1 = arith.constant 0 : i32
    return %c0_i32, %c0_i32_0 : i32, i32
  }
  func.func @transform_2(%arg0: i32) -> (i32, i32) {
    %c0_i32 = arith.constant 0 : i32
    %c0_i32_0 = arith.constant 0 : i32
    %c0_i32_1 = arith.constant 0 : i32
    return %c0_i32, %c0_i32_0 : i32, i32
  }
  func.func @transform_3(%arg0: i32) -> (i32, i32, i32) {
    %c0_i32 = arith.constant 0 : i32
    %c0_i32_0 = arith.constant 0 : i32
    %c0_i32_1 = arith.constant 0 : i32
    %c0_i32_2 = arith.constant 0 : i32
    return %c0_i32, %c0_i32_0, %c0_i32_1 : i32, i32, i32
  }
  func.func @transform_4(%arg0: i32) -> (i32, i32, i32) {
    %c0_i32 = arith.constant 0 : i32
    %c0_i32_0 = arith.constant 0 : i32
    %c0_i32_1 = arith.constant 0 : i32
    return %arg0, %c0_i32, %c0_i32_0 : i32, i32, i32
  }
}

</mosaic_0001>

<llo_original>
// kernel: single_layer_forward.1
$region0: #{single_layer_forward.1}
  #allocation0 [shape = 'u32[]', space=smem, size = 0x4, offset = 0x4, fixed_abs, tag = 'smem constant byte address 0x4 - core index']
  #allocation1 [shape = 'u32[144,128]{1,0:T(1,128)}', space=vmem, size = 0x12000, scoped, tag = 'internal scratch']
  #allocation2 [shape = 'f32[16,512]{1,0:T(8,128)}', space=vmem, size = 0x8000, scoped, tag = 'scratch operand']
  %s0 = inlined_call_operand.vmem [shape: f32[2,16,256], index: 0, kind: input, shape index: {}]
  %s1 = inlined_call_operand.vmem [shape: f32[16,1], index: 1, kind: input, shape index: {}]
  %s2 = inlined_call_operand.vmem [shape: f32[16,1], index: 2, kind: input, shape index: {}]
  %s3 = inlined_call_operand.vmem [shape: f32[9,12,16], index: 3, kind: input, shape index: {}]
  %s4 = inlined_call_operand.vmem [shape: f32[2,28,256], index: 4, kind: output, shape index: {}]
  %s5 = sld [smem:[#allocation0]]
  $region49: #{single_layer_forward.1} parent=0
    _
  %s7 = ssub.s32 1, %s5
  %s8 = scalar_select 0, %s7, %s5
  loop: start=0, step=1, limit=4
  $region2: #{single_layer_forward.1} parent=0 // loop_pre_header
    _
  $region3: #{single_layer_forward.1} parent=0 // loop_header
    %s10 = sphi 0, %s14
    %p11 = scmp.ge.s32.totalorder %s10, 4
    %s20 = sphi 0, %s22
    %s23 = sphi 0, %s20
    %s24 = sphi 0, %s23
    %s40 = sphi 0, %s24
    %s44 = sphi 0, %s44
    %s46 = sphi 0, %s44
    %s47 = sphi 0, %s46
    %s61 = sphi 0, %s47
    %s65 = sphi 0, %s65
    %s67 = sphi 0, %s65
    %s68 = sphi 0, %s67
    %s82 = sphi 0, %s68
    %s86 = sphi 0, %s86
    %s88 = sphi 0, %s86
    %s89 = sphi 0, %s88
    %s103 = sphi 0, %s89
    %s109 = sphi 0, %s111
    %s112 = sphi 0, %s109
    %s113 = sphi 0, %s112
    %s129 = sphi 0, %s113
  $region4: #{single_layer_forward.1} parent=0 // loop_header_branch
    %13 = sbr.rel (%p11) target = $region8
  $region5: #{single_layer_forward.1} parent=0 // loop_body
    %s15 = ssub.s32 %s10, 1
    %s16 = ssub.s32 %s10, 2
    %s17 = sadd.s32 %s10, 1
    %s18 = ssub.s32 %s10, %s17
    %p19 = scmp.eq.s32.totalorder %s18, 0
    %s21 = sadd.s32 %s20, 1
    %s22 = scalar_select %p19, %s20, %s21
    %p25 = pneg %p19
    %p26 = scmp.eq.s32.totalorder %s10, 1
    %p27 = por %p25, %p26
    %p28 = scmp.ne.s32.totalorder %s20, %s23
    %p29 = scmp.eq.s32.totalorder %s10, 0
    %p30 = por %p28, %p29
    %p31 = scmp.ne.s32.totalorder %s20, %s23
    %p32 = scmp.eq.s32.totalorder %s15, 1
    %p33 = por %p31, %p32
    %p34 = scmp.ne.s32.totalorder %s23, %s24
    %p35 = scmp.eq.s32.totalorder %s15, 0
    %p36 = por %p34, %p35
    %p37 = scmp.ne.s32.totalorder %s23, %s24
    %p38 = scmp.eq.s32.totalorder %s16, 1
    %p39 = por %p37, %p38
    %p41 = scmp.ne.s32.totalorder %s24, %s40
    %p42 = scmp.eq.s32.totalorder %s16, 0
    %p43 = por %p41, %p42
    %s45 = sadd.s32 %s44, 1
    %p48 = scmp.eq.s32.totalorder %s10, 1
    %p49 = scmp.ne.s32.totalorder %s44, %s46
    %p50 = scmp.eq.s32.totalorder %s10, 0
    %p51 = por %p49, %p50
    %p52 = scmp.ne.s32.totalorder %s44, %s46
    %p53 = scmp.eq.s32.totalorder %s15, 1
    %p54 = por %p52, %p53
    %p55 = scmp.ne.s32.totalorder %s46, %s47
    %p56 = scmp.eq.s32.totalorder %s15, 0
    %p57 = por %p55, %p56
    %p58 = scmp.ne.s32.totalorder %s46, %s47
    %p59 = scmp.eq.s32.totalorder %s16, 1
    %p60 = por %p58, %p59
    %p62 = scmp.ne.s32.totalorder %s47, %s61
    %p63 = scmp.eq.s32.totalorder %s16, 0
    %p64 = por %p62, %p63
    %s66 = sadd.s32 %s65, 1
    %p69 = scmp.eq.s32.totalorder %s10, 1
    %p70 = scmp.ne.s32.totalorder %s65, %s67
    %p71 = scmp.eq.s32.totalorder %s10, 0
    %p72 = por %p70, %p71
    %p73 = scmp.ne.s32.totalorder %s65, %s67
    %p74 = scmp.eq.s32.totalorder %s15, 1
    %p75 = por %p73, %p74
    %p76 = scmp.ne.s32.totalorder %s67, %s68
    %p77 = scmp.eq.s32.totalorder %s15, 0
    %p78 = por %p76, %p77
    %p79 = scmp.ne.s32.totalorder %s67, %s68
    %p80 = scmp.eq.s32.totalorder %s16, 1
    %p81 = por %p79, %p80
    %p83 = scmp.ne.s32.totalorder %s68, %s82
    %p84 = scmp.eq.s32.totalorder %s16, 0
    %p85 = por %p83, %p84
    %s87 = sadd.s32 %s86, 1
    %p90 = scmp.eq.s32.totalorder %s10, 1
    %p91 = scmp.ne.s32.totalorder %s86, %s88
    %p92 = scmp.eq.s32.totalorder %s10, 0
    %p93 = por %p91, %p92
    %p94 = scmp.ne.s32.totalorder %s86, %s88
    %p95 = scmp.eq.s32.totalorder %s15, 1
    %p96 = por %p94, %p95
    %p97 = scmp.ne.s32.totalorder %s88, %s89
    %p98 = scmp.eq.s32.totalorder %s15, 0
    %p99 = por %p97, %p98
    %p100 = scmp.ne.s32.totalorder %s88, %s89
    %p101 = scmp.eq.s32.totalorder %s16, 1
    %p102 = por %p100, %p101
    %p104 = scmp.ne.s32.totalorder %s89, %s103
    %p105 = scmp.eq.s32.totalorder %s16, 0
    %p106 = por %p104, %p105
    %s107 = ssub.s32 %s10, %s17
    %p108 = scmp.eq.s32.totalorder %s107, 0
    %s110 = sadd.s32 %s109, 1
    %s111 = scalar_select %p108, %s109, %s110
    %p114 = pneg %p108
    %p115 = scmp.eq.s32.totalorder %s10, 1
    %p116 = por %p114, %p115
    %p117 = scmp.ne.s32.totalorder %s109, %s112
    %p118 = scmp.eq.s32.totalorder %s10, 0
    %p119 = por %p117, %p118
    %p120 = scmp.ne.s32.totalorder %s109, %s112
    %p121 = scmp.eq.s32.totalorder %s15, 1
    %p122 = por %p120, %p121
    %p123 = scmp.ne.s32.totalorder %s112, %s113
    %p124 = scmp.eq.s32.totalorder %s15, 0
    %p125 = por %p123, %p124
    %p126 = scmp.ne.s32.totalorder %s112, %s113
    %p127 = scmp.eq.s32.totalorder %s16, 1
    %p128 = por %p126, %p127
    %p130 = scmp.ne.s32.totalorder %s113, %s129
    %p131 = scmp.eq.s32.totalorder %s16, 0
    %p132 = por %p130, %p131
    %p133 = scmp.le.s32.totalorder 1, %s10
    %p134 = scmp.lt.s32.totalorder %s10, 3
    %p135 = pnand %p133, %p134
    %p136 = pneg %p135
    // Predicated region
    $region9: #{single_layer_forward.1} parent=5 // pred_check
      _
    $region10: #{single_layer_forward.1} parent=5 // pred_check_branch
      %138 = sbr.rel (%p135) target = $region12
    $region11: #{single_layer_forward.1} parent=5 // pred_region
      %s139 = ssub.s32 %s10, 1
      // Predicated region
      $region13: #{single_layer_forward.1} parent=11 // pred_check
        %p140 = pneg %p57
      $region14: #{single_layer_forward.1} parent=11 // pred_check_branch
        %142 = sbr.rel (%p140) target = $region16
      $region15: #{single_layer_forward.1} parent=11 // pred_region
        _
      $region16: #{single_layer_forward.1} parent=11 // pred_fallthru
        _
      // Predicated region
      $region17: #{single_layer_forward.1} parent=11 // pred_check
        %p143 = pneg %p78
      $region18: #{single_layer_forward.1} parent=11 // pred_check_branch
        %145 = sbr.rel (%p143) target = $region20
      $region19: #{single_layer_forward.1} parent=11 // pred_region
        _
      $region20: #{single_layer_forward.1} parent=11 // pred_fallthru
        _
      // Predicated region
      $region21: #{single_layer_forward.1} parent=11 // pred_check
        %p146 = pneg %p99
      $region22: #{single_layer_forward.1} parent=11 // pred_check_branch
        %148 = sbr.rel (%p146) target = $region24
      $region23: #{single_layer_forward.1} parent=11 // pred_region
        _
      $region24: #{single_layer_forward.1} parent=11 // pred_fallthru
        _
    $region12: #{single_layer_forward.1} parent=5 // pred_fallthru
      _
    %p149 = scmp.lt.s32.totalorder %s10, 2
    // Predicated region
    $region25: #{single_layer_forward.1} parent=5 // pred_check
      %p150 = pneg %p149
    $region26: #{single_layer_forward.1} parent=5 // pred_check_branch
      %152 = sbr.rel (%p150) target = $region28
    $region27: #{single_layer_forward.1} parent=5 // pred_region
      // Predicated region
      $region29: #{single_layer_forward.1} parent=27 // pred_check
        %p153 = pneg %p30
      $region30: #{single_layer_forward.1} parent=27 // pred_check_branch
        %155 = sbr.rel (%p153) target = $region32
      $region31: #{single_layer_forward.1} parent=27 // pred_region
        %p156 = scmp.lt.s32.totalorder %s10, 1
        %s157 = scalar_select %p156, %s10, 1
        %s158 = smul.addr %s157, 4
        %s159 = smul.addr %s158, 8
        %s160 = scalar_lea.vmem %s0, %s159
      $region32: #{single_layer_forward.1} parent=27 // pred_fallthru
        _
    $region28: #{single_layer_forward.1} parent=5 // pred_fallthru
      _
    %p161 = scmp.le.s32.totalorder 1, %s10
    %p162 = scmp.lt.s32.totalorder %s10, 3
    %p163 = pnand %p161, %p162
    %p164 = pneg %p163
    // Predicated region
    $region33: #{single_layer_forward.1} parent=5 // pred_check
      _
    $region34: #{single_layer_forward.1} parent=5 // pred_check_branch
      %166 = sbr.rel (%p163) target = $region36
    $region35: #{single_layer_forward.1} parent=5 // pred_region
      %s167 = ssub.s32 %s10, 1
      %p168 = scmp.lt.s32.totalorder %s15, 1
      %s169 = scalar_select %p168, %s15, 1
      %s170 = smul.addr %s169, 4
      %s171 = smul.addr %s170, 8
      %s172 = scalar_lea.vmem %s0, %s171
      %p173 = pneg %p36
      %p174 = pneg %p33
      %p175 = pneg %p57
      %p176 = pneg %p54
      %p177 = pneg %p78
      %p178 = pneg %p75
      %p179 = pneg %p99
      %p180 = pneg %p96
      %p181 = pneg %p125
      %p182 = pneg %p122
      %p183 = scmp.lt.s32.totalorder %s15, 1
      %s184 = scalar_select %p183, %s15, 1
      %s185 = smul.addr %s184, 8
      %s186 = smul.addr %s185, 8
      %s187 = scalar_lea.vmem %s4, %s186
      %p188 = scmp.lt.s32.totalorder %s15, 1
      %s189 = scalar_select %p188, %s15, 1
      %s190 = smul.addr %s189, 4
      %s191 = smul.addr %s190, 8
      %s192 = scalar_lea.vmem %s0, %s191
      %p193 = scmp.lt.s32.totalorder %s15, 1
      %s194 = scalar_select %p193, %s15, 1
      %s195 = smul.addr %s194, 8
      %s196 = smul.addr %s195, 8
      %s197 = scalar_lea.vmem %s4, %s196
      %v198 = vld [vmem:[%s192] sm:$0xff]
      %v199 = vld [vmem:[%s192 + $0x8] sm:$0xff]
      %v200 = vld [vmem:[%s192 + $0x10] sm:$0xff]
      %v201 = vld [vmem:[%s192 + $0x18] sm:$0xff]
      %v202 = vld [vmem:[%s1] sm:$0xff]
      %v203 = vld [vmem:[%s1 + $0x8] sm:$0xff]
      %205 = vset.pattern.permute.xlu0 0
      %206 = vperm.xlu0 %205, %v202
      %v207 = vpop.permute.xlu0 %206
      %210 = vset.pattern.permute.xlu0 0
      %211 = vperm.xlu0 %210, %v203
      %v212 = vpop.permute.xlu0 %211
      %v214 = vmul.f32 %v198, %v207
      %v215 = vmul.f32 %v199, %v207
      %v216 = vmul.f32 %v200, %v212
      %v217 = vmul.f32 %v201, %v212
      %v218 = vld [vmem:[%s2] sm:$0xff]
      %v219 = vld [vmem:[%s2 + $0x8] sm:$0xff]
      %221 = vset.pattern.permute.xlu0 0
      %222 = vperm.xlu0 %221, %v218
      %v223 = vpop.permute.xlu0 %222
      %226 = vset.pattern.permute.xlu0 0
      %227 = vperm.xlu0 %226, %v219
      %v228 = vpop.permute.xlu0 %227
      %v230 = vadd.f32 %v214, %v223
      %v231 = vadd.f32 %v215, %v223
      %v232 = vadd.f32 %v216, %v228
      %v233 = vadd.f32 %v217, %v228
      %v234 = vmax.f32 %v230, 0.0
      %v235 = vmax.f32 %v231, 0.0
      %v236 = vmax.f32 %v232, 0.0
      %v237 = vmax.f32 %v233, 0.0
      %238 = vst [vmem:[#allocation2] sm:$0xff] 0.0
      %239 = vst [vmem:[#allocation2 + $0x20] sm:$0xff] 0.0
      %240 = vst [vmem:[#allocation2 + $0x18] sm:$0xff] 0.0
      %241 = vst [vmem:[#allocation2 + $0x38] sm:$0xff] 0.0
      %242 = vst [vmem:[#allocation2 + $0x8] sm:$0xff] %v234
      %243 = vst [vmem:[#allocation2 + $0x10] sm:$0xff] %v235
      %244 = vst [vmem:[#allocation2 + $0x28] sm:$0xff] %v236
      %245 = vst [vmem:[#allocation2 + $0x30] sm:$0xff] %v237
      %v246 = vlaneseq
      %v247 = vand.u32 %v246, 127
      %v248 = vadd.s32 %v247, 128
      %vm249 = vcmp.lt.s32.totalorder %v247, 0
      %v250 = vsub.s32 0, %v247
      %v251 = vsel %vm249, %v250, %v247
      %v252 = vshrl.u32 %v251, 4
      %v253 = vand.u32 %v251, 15
      %v254 = vsub.s32 0, %v253
      %v255 = vsel %vm249, %v254, %v253
      %vm256 = vcmp.lt.s32.totalorder %v248, 0
      %v257 = vsub.s32 0, %v248
      %v258 = vsel %vm256, %v257, %v248
      %v259 = vshrl.u32 %v258, 4
      %v260 = vand.u32 %v258, 15
      %v261 = vsub.s32 0, %v260
      %v262 = vsel %vm256, %v261, %v260
      %vm263 = vcmp.ne.s32.totalorder %v255, 0
      %vm264 = vcmp.ne.s32.totalorder %v262, 0
      %vm265 = vcmp.lt.s32.totalorder %v255, 0
      %vm266 = vcmp.lt.s32.totalorder %v262, 0
      %vm267 = vmand %vm265, %vm263
      %vm268 = vmand %vm266, %vm264
      %v269 = vadd.s32 %v255, 16
      %v270 = vadd.s32 %v262, 16
      %v271 = vsel %vm267, %v269, %v255
      %v272 = vsel %vm268, %v270, %v262
      %v273 = vld [vmem:[#allocation2] sm:$0xff]
      %v274 = vld [vmem:[#allocation2 + $0x8] sm:$0xff]
      %v275 = vld [vmem:[#allocation2 + $0x10] sm:$0xff]
      %v276 = vld [vmem:[#allocation2 + $0x20] sm:$0xff]
      %v277 = vld [vmem:[#allocation2 + $0x28] sm:$0xff]
      %v278 = vld [vmem:[#allocation2 + $0x30] sm:$0xff]
      %v279 = vld [vmem:[%s3] sm:$0xff]
      %v280 = vld [vmem:[%s3 + $0x8] sm:$0xf]
      %s281 = scalar_lea.vmem %s3, 48
      %v282 = vld [vmem:[%s281] sm:$0xff]
      %v283 = vld [vmem:[%s281 + $0x8] sm:$0xf]
      %290 = vrot.lane.b32.xlu0 %v273, 1
      %v291 = vpop.permute.xlu0 %290
      %292 = vrot.lane.b32.xlu0 %v274, 1
      %v293 = vpop.permute.xlu0 %292
      %294 = vrot.lane.b32.xlu0 %v275, 1
      %v295 = vpop.permute.xlu0 %294
      %296 = vrot.lane.b32.xlu0 %v276, 1
      %v297 = vpop.permute.xlu0 %296
      %298 = vrot.lane.b32.xlu0 %v277, 1
      %v299 = vpop.permute.xlu0 %298
      %300 = vrot.lane.b32.xlu0 %v278, 1
      %v301 = vpop.permute.xlu0 %300
      %vm302 = vcmask 7168
      %v303 = vsel %vm302, %v291, %v293
      %v304 = vsel %vm302, %v293, %v295
      %v305 = vsel %vm302, %v297, %v299
      %v306 = vsel %vm302, %v299, %v301
      %vm311 = vcmask 130048
      %v313 = vsel %vm311, %v282, 0
      %v316 = vsel %vm311, %v283, 0
      %318 = vmatprep.subr.mxu0 %v304
      %319 = vmatpush1.msra.mxu0 %v303
      %320 = vmatprep.subr.mxu0 %v306
      %321 = vmatpush1.msra.mxu0 %v305
      %322 = vmatprep.subr.mxu0 0.0
      %323 = vmatpush1.msra.mxu0 0.0
      %324 = vmatprep.subr.mxu0 0.0
      %325 = vmatpush1.msra.mxu0 0.0
      %326 = vmatprep.subr.mxu0 0.0
      %327 = vmatpush1.msra.mxu0 0.0
      %328 = vmatprep.subr.mxu0 0.0
      %329 = vmatpush1.msra.mxu0 0.0
      %330 = vmatprep.subr.mxu0 0.0
      %331 = vmatpush1.msra.mxu0 0.0
      %332 = vmatprep.subr.mxu0 0.0
      %333 = vmatpush1.msra.mxu0 0.0
      %334 = vmatprep.subr.mxu0 0.0
      %335 = vmatpush1.msra.mxu0 0.0
      %336 = vmatprep.subr.mxu0 0.0
      %337 = vmatpush1.msra.mxu0 0.0
      %338 = vmatprep.subr.mxu0 0.0
      %339 = vmatpush1.msra.mxu0 0.0
      %340 = vmatprep.subr.mxu0 0.0
      %341 = vmatpush1.msra.mxu0 0.0
      %342 = vmatprep.subr.mxu0 0.0
      %343 = vmatpush1.msra.mxu0 0.0
      %344 = vmatprep.subr.mxu0 0.0
      %345 = vmatpush1.msra.mxu0 0.0
      %346 = vmatprep.subr.mxu0 0.0
      %347 = vmatpush1.msra.mxu0 0.0
      %348 = vmatprep.subr.mxu0 0.0
      %349 = vmatpush1.msra.mxu0 0.0
      %350 = vmatprep.subr.mxu0 0.0
      %351 = vmatpush1.msra.mxu0 0.0
      %352 = vmatprep.subr.mxu0 0.0
      %353 = vmatpush1.msra.mxu0 0.0
      %354 = vmatprep.subr.mxu0 0.0
      %355 = vmatpush1.msra.mxu0 0.0
      %356 = vmatprep.subr.mxu0 0.0
      %357 = vmatpush1.msra.mxu0 0.0
      %358 = vmatprep.subr.mxu0 0.0
      %359 = vmatpush1.msra.mxu0 0.0
      %360 = vmatprep.subr.mxu0 0.0
      %361 = vmatpush1.msra.mxu0 0.0
      %362 = vmatprep.subr.mxu0 0.0
      %363 = vmatpush1.msra.mxu0 0.0
      %364 = vmatprep.subr.mxu0 0.0
      %365 = vmatpush1.msra.mxu0 0.0
      %366 = vmatprep.subr.mxu0 0.0
      %367 = vmatpush1.msra.mxu0 0.0
      %368 = vmatprep.subr.mxu0 0.0
      %369 = vmatpush1.msra.mxu0 0.0
      %370 = vmatprep.subr.mxu0 0.0
      %371 = vmatpush1.msra.mxu0 0.0
      %372 = vmatprep.subr.mxu0 0.0
      %373 = vmatpush1.msra.mxu0 0.0
      %374 = vmatprep.subr.mxu0 0.0
      %375 = vmatpush1.msra.mxu0 0.0
      %376 = vmatprep.subr.mxu0 0.0
      %377 = vmatpush1.msra.mxu0 0.0
      %378 = vmatprep.subr.mxu0 0.0
      %379 = vmatpush1.msra.mxu0 0.0
      %380 = vmatprep.subr.mxu0 0.0
      %381 = vmatpush1.msra.mxu0 0.0
      %382 = vmatprep.mubr.f32.mxu0 0.0
      %383 = vmatmul.mubr.f32.gmra.mrb[0].mxu0 %v313
      %v384 = vpop.f32.mrb[0].mxu0
      %v385 = vadd.f32 0.0, %v384
      %v386 = vpop.f32.mrb[0].mxu0
      %v387 = vadd.f32 0.0, %v386
      %388 = vmatprep.mubr.f32.mxu0 0.0
      %389 = vmatmul.mubr.f32.gmra.mrb[0].mxu0 %v316
      %v390 = vpop.f32.mrb[0].mxu0
      %v391 = vadd.f32 0.0, %v390
      %v392 = vpop.f32.mrb[0].mxu0
      %v393 = vadd.f32 0.0, %v392
      %394 = vdwg.mxu0
      %395 = vrot.lane.b32.xlu0 %v273, 17
      %v396 = vpop.permute.xlu0 %395
      %397 = vrot.lane.b32.xlu0 %v274, 17
      %v398 = vpop.permute.xlu0 %397
      %399 = vrot.lane.b32.xlu0 %v275, 17
      %v400 = vpop.permute.xlu0 %399
      %401 = vrot.lane.b32.xlu0 %v276, 17
      %v402 = vpop.permute.xlu0 %401
      %403 = vrot.lane.b32.xlu0 %v277, 17
      %v404 = vpop.permute.xlu0 %403
      %405 = vrot.lane.b32.xlu0 %v278, 17
      %v406 = vpop.permute.xlu0 %405
      %vm407 = vcmask 138240
      %v408 = vsel %vm407, %v396, %v398
      %v409 = vsel %vm407, %v398, %v400
      %v410 = vsel %vm407, %v402, %v404
      %v411 = vsel %vm407, %v404, %v406
      %v417 = vsel %vm311, %v279, 0
      %v420 = vsel %vm311, %v280, 0
      %422 = vmatprep.subr.mxu0 %v409
      %423 = vmatpush1.msra.mxu0 %v408
      %424 = vmatprep.subr.mxu0 %v411
      %425 = vmatpush1.msra.mxu0 %v410
      %426 = vmatprep.subr.mxu0 0.0
      %427 = vmatpush1.msra.mxu0 0.0
      %428 = vmatprep.subr.mxu0 0.0
      %429 = vmatpush1.msra.mxu0 0.0
      %430 = vmatprep.subr.mxu0 0.0
      %431 = vmatpush1.msra.mxu0 0.0
      %432 = vmatprep.subr.mxu0 0.0
      %433 = vmatpush1.msra.mxu0 0.0
      %434 = vmatprep.subr.mxu0 0.0
      %435 = vmatpush1.msra.mxu0 0.0
      %436 = vmatprep.subr.mxu0 0.0
      %437 = vmatpush1.msra.mxu0 0.0
      %438 = vmatprep.subr.mxu0 0.0
      %439 = vmatpush1.msra.mxu0 0.0
      %440 = vmatprep.subr.mxu0 0.0
      %441 = vmatpush1.msra.mxu0 0.0
      %442 = vmatprep.subr.mxu0 0.0
      %443 = vmatpush1.msra.mxu0 0.0
      %444 = vmatprep.subr.mxu0 0.0
      %445 = vmatpush1.msra.mxu0 0.0
      %446 = vmatprep.subr.mxu0 0.0
      %447 = vmatpush1.msra.mxu0 0.0
      %448 = vmatprep.subr.mxu0 0.0
      %449 = vmatpush1.msra.mxu0 0.0
      %450 = vmatprep.subr.mxu0 0.0
      %451 = vmatpush1.msra.mxu0 0.0
      %452 = vmatprep.subr.mxu0 0.0
      %453 = vmatpush1.msra.mxu0 0.0
      %454 = vmatprep.subr.mxu0 0.0
      %455 = vmatpush1.msra.mxu0 0.0
      %456 = vmatprep.subr.mxu0 0.0
      %457 = vmatpush1.msra.mxu0 0.0
      %458 = vmatprep.subr.mxu0 0.0
      %459 = vmatpush1.msra.mxu0 0.0
      %460 = vmatprep.subr.mxu0 0.0
      %461 = vmatpush1.msra.mxu0 0.0
      %462 = vmatprep.subr.mxu0 0.0
      %463 = vmatpush1.msra.mxu0 0.0
      %464 = vmatprep.subr.mxu0 0.0
      %465 = vmatpush1.msra.mxu0 0.0
      %466 = vmatprep.subr.mxu0 0.0
      %467 = vmatpush1.msra.mxu0 0.0
      %468 = vmatprep.subr.mxu0 0.0
      %469 = vmatpush1.msra.mxu0 0.0
      %470 = vmatprep.subr.mxu0 0.0
      %471 = vmatpush1.msra.mxu0 0.0
      %472 = vmatprep.subr.mxu0 0.0
      %473 = vmatpush1.msra.mxu0 0.0
      %474 = vmatprep.subr.mxu0 0.0
      %475 = vmatpush1.msra.mxu0 0.0
      %476 = vmatprep.subr.mxu0 0.0
      %477 = vmatpush1.msra.mxu0 0.0
      %478 = vmatprep.subr.mxu0 0.0
      %479 = vmatpush1.msra.mxu0 0.0
      %480 = vmatprep.subr.mxu0 0.0
      %481 = vmatpush1.msra.mxu0 0.0
      %482 = vmatprep.subr.mxu0 0.0
      %483 = vmatpush1.msra.mxu0 0.0
      %484 = vmatprep.subr.mxu0 0.0
      %485 = vmatpush1.msra.mxu0 0.0
      %486 = vmatprep.mubr.f32.mxu0 0.0
      %487 = vmatmul.mubr.f32.gmra.mrb[0].mxu0 %v417
      %v488 = vpop.f32.mrb[0].mxu0
      %v489 = vadd.f32 %v385, %v488
      %v490 = vpop.f32.mrb[0].mxu0
      %v491 = vadd.f32 %v387, %v490
      %492 = vmatprep.mubr.f32.mxu0 0.0
      %493 = vmatmul.mubr.f32.gmra.mrb[0].mxu0 %v420
      %v494 = vpop.f32.mrb[0].mxu0
      %v495 = vadd.f32 %v391, %v494
      %v496 = vpop.f32.mrb[0].mxu0
      %v497 = vadd.f32 %v393, %v496
      %498 = vdwg.mxu0
      %v499 = vld [vmem:[#allocation2 + $0x8] sm:$0xff]
      %v500 = vld [vmem:[#allocation2 + $0x10] sm:$0xff]
      %v501 = vld [vmem:[#allocation2 + $0x18] sm:$0xff]
      %v502 = vld [vmem:[#allocation2 + $0x28] sm:$0xff]
      %v503 = vld [vmem:[#allocation2 + $0x30] sm:$0xff]
      %v504 = vld [vmem:[#allocation2 + $0x38] sm:$0xff]
      %s505 = scalar_lea.vmem %s3, 96
      %v506 = vld [vmem:[%s505] sm:$0xff]
      %v507 = vld [vmem:[%s505 + $0x8] sm:$0xf]
      %514 = vrot.lane.b32.xlu0 %v499, 113
      %v515 = vpop.permute.xlu0 %514
      %516 = vrot.lane.b32.xlu0 %v500, 113
      %v517 = vpop.permute.xlu0 %516
      %518 = vrot.lane.b32.xlu0 %v501, 113
      %v519 = vpop.permute.xlu0 %518
      %520 = vrot.lane.b32.xlu0 %v502, 113
      %v521 = vpop.permute.xlu0 %520
      %522 = vrot.lane.b32.xlu0 %v503, 113
      %v523 = vpop.permute.xlu0 %522
      %524 = vrot.lane.b32.xlu0 %v504, 113
      %v525 = vpop.permute.xlu0 %524
      %vm526 = vcmask 924672
      %v527 = vsel %vm526, %v515, %v517
      %v528 = vsel %vm526, %v517, %v519
      %v529 = vsel %vm526, %v521, %v523
      %v530 = vsel %vm526, %v523, %v525
      %v536 = vsel %vm311, %v506, 0
      %v539 = vsel %vm311, %v507, 0
      %541 = vmatprep.subr.mxu0 %v528
      %542 = vmatpush1.msra.mxu0 %v527
      %543 = vmatprep.subr.mxu0 %v530
      %544 = vmatpush1.msra.mxu0 %v529
      %545 = vmatprep.subr.mxu0 0.0
      %546 = vmatpush1.msra.mxu0 0.0
      %547 = vmatprep.subr.mxu0 0.0
      %548 = vmatpush1.msra.mxu0 0.0
      %549 = vmatprep.subr.mxu0 0.0
      %550 = vmatpush1.msra.mxu0 0.0
      %551 = vmatprep.subr.mxu0 0.0
      %552 = vmatpush1.msra.mxu0 0.0
      %553 = vmatprep.subr.mxu0 0.0
      %554 = vmatpush1.msra.mxu0 0.0
      %555 = vmatprep.subr.mxu0 0.0
      %556 = vmatpush1.msra.mxu0 0.0
      %557 = vmatprep.subr.mxu0 0.0
      %558 = vmatpush1.msra.mxu0 0.0
      %559 = vmatprep.subr.mxu0 0.0
      %560 = vmatpush1.msra.mxu0 0.0
      %561 = vmatprep.subr.mxu0 0.0
      %562 = vmatpush1.msra.mxu0 0.0
      %563 = vmatprep.subr.mxu0 0.0
      %564 = vmatpush1.msra.mxu0 0.0
      %565 = vmatprep.subr.mxu0 0.0
      %566 = vmatpush1.msra.mxu0 0.0
      %567 = vmatprep.subr.mxu0 0.0
      %568 = vmatpush1.msra.mxu0 0.0
      %569 = vmatprep.subr.mxu0 0.0
      %570 = vmatpush1.msra.mxu0 0.0
      %571 = vmatprep.subr.mxu0 0.0
      %572 = vmatpush1.msra.mxu0 0.0
      %573 = vmatprep.subr.mxu0 0.0
      %574 = vmatpush1.msra.mxu0 0.0
      %575 = vmatprep.subr.mxu0 0.0
      %576 = vmatpush1.msra.mxu0 0.0
      %577 = vmatprep.subr.mxu0 0.0
      %578 = vmatpush1.msra.mxu0 0.0
      %579 = vmatprep.subr.mxu0 0.0
      %580 = vmatpush1.msra.mxu0 0.0
      %581 = vmatprep.subr.mxu0 0.0
      %582 = vmatpush1.msra.mxu0 0.0
      %583 = vmatprep.subr.mxu0 0.0
      %584 = vmatpush1.msra.mxu0 0.0
      %585 = vmatprep.subr.mxu0 0.0
      %586 = vmatpush1.msra.mxu0 0.0
      %587 = vmatprep.subr.mxu0 0.0
      %588 = vmatpush1.msra.mxu0 0.0
      %589 = vmatprep.subr.mxu0 0.0
      %590 = vmatpush1.msra.mxu0 0.0
      %591 = vmatprep.subr.mxu0 0.0
      %592 = vmatpush1.msra.mxu0 0.0
      %593 = vmatprep.subr.mxu0 0.0
      %594 = vmatpush1.msra.mxu0 0.0
      %595 = vmatprep.subr.mxu0 0.0
      %596 = vmatpush1.msra.mxu0 0.0
      %597 = vmatprep.subr.mxu0 0.0
      %598 = vmatpush1.msra.mxu0 0.0
      %599 = vmatprep.subr.mxu0 0.0
      %600 = vmatpush1.msra.mxu0 0.0
      %601 = vmatprep.subr.mxu0 0.0
      %602 = vmatpush1.msra.mxu0 0.0
      %603 = vmatprep.subr.mxu0 0.0
      %604 = vmatpush1.msra.mxu0 0.0
      %605 = vmatprep.mubr.f32.mxu0 0.0
      %606 = vmatmul.mubr.f32.gmra.mrb[0].mxu0 %v536
      %v607 = vpop.f32.mrb[0].mxu0
      %v608 = vadd.f32 0.0, %v607
      %v609 = vpop.f32.mrb[0].mxu0
      %v610 = vadd.f32 0.0, %v609
      %611 = vmatprep.mubr.f32.mxu0 0.0
      %612 = vmatmul.mubr.f32.gmra.mrb[0].mxu0 %v539
      %v613 = vpop.f32.mrb[0].mxu0
      %v614 = vadd.f32 0.0, %v613
      %v615 = vpop.f32.mrb[0].mxu0
      %v616 = vadd.f32 0.0, %v615
      %617 = vdwg.mxu0
      %v618 = vadd.f32 %v489, %v608
      %v619 = vadd.f32 %v491, %v610
      %v620 = vadd.f32 %v495, %v614
      %v621 = vadd.f32 %v497, %v616
      %vm622 = vcmp.ge.s32.totalorder %v271, 1
      %vm623 = vcmp.ge.s32.totalorder %v272, 1
      %v624 = vsel %vm622, 1, 0
      %v625 = vsel %vm623, 1, 0
      %vm626 = vcmp.eq.s32.totalorder %v624, 1
      %vm627 = vcmp.eq.s32.totalorder %v625, 1
      %v628 = vsel %vm626, %v618, 0.0
      %v629 = vsel %vm627, %v619, 0.0
      %v630 = vsel %vm626, %v620, 0.0
      %v631 = vsel %vm627, %v621, 0.0
      %v632 = vadd.f32 %v628, 0.0
      %v633 = vadd.f32 %v629, 0.0
      %v634 = vadd.f32 %v630, 0.0
      %v635 = vadd.f32 %v631, 0.0
      %s636 = scalar_lea.vmem %s3, 16
      %v637 = vld [vmem:[%s636] sm:$0xff]
      %v638 = vld [vmem:[%s636 + $0x8] sm:$0xf]
      %s639 = scalar_lea.vmem %s3, 64
      %v640 = vld [vmem:[%s639] sm:$0xff]
      %v641 = vld [vmem:[%s639 + $0x8] sm:$0xf]
      %v643 = vsel %vm311, %v640, 0
      %v646 = vsel %vm311, %v641, 0
      %648 = vmatprep.subr.mxu0 %v275
      %649 = vmatpush1.msra.mxu0 %v274
      %650 = vmatprep.subr.mxu0 %v278
      %651 = vmatpush1.msra.mxu0 %v277
      %652 = vmatprep.subr.mxu0 0.0
      %653 = vmatpush1.msra.mxu0 0.0
      %654 = vmatprep.subr.mxu0 0.0
      %655 = vmatpush1.msra.mxu0 0.0
      %656 = vmatprep.subr.mxu0 0.0
      %657 = vmatpush1.msra.mxu0 0.0
      %658 = vmatprep.subr.mxu0 0.0
      %659 = vmatpush1.msra.mxu0 0.0
      %660 = vmatprep.subr.mxu0 0.0
      %661 = vmatpush1.msra.mxu0 0.0
      %662 = vmatprep.subr.mxu0 0.0
      %663 = vmatpush1.msra.mxu0 0.0
      %664 = vmatprep.subr.mxu0 0.0
      %665 = vmatpush1.msra.mxu0 0.0
      %666 = vmatprep.subr.mxu0 0.0
      %667 = vmatpush1.msra.mxu0 0.0
      %668 = vmatprep.subr.mxu0 0.0
      %669 = vmatpush1.msra.mxu0 0.0
      %670 = vmatprep.subr.mxu0 0.0
      %671 = vmatpush1.msra.mxu0 0.0
      %672 = vmatprep.subr.mxu0 0.0
      %673 = vmatpush1.msra.mxu0 0.0
      %674 = vmatprep.subr.mxu0 0.0
      %675 = vmatpush1.msra.mxu0 0.0
      %676 = vmatprep.subr.mxu0 0.0
      %677 = vmatpush1.msra.mxu0 0.0
      %678 = vmatprep.subr.mxu0 0.0
      %679 = vmatpush1.msra.mxu0 0.0
      %680 = vmatprep.subr.mxu0 0.0
      %681 = vmatpush1.msra.mxu0 0.0
      %682 = vmatprep.subr.mxu0 0.0
      %683 = vmatpush1.msra.mxu0 0.0
      %684 = vmatprep.subr.mxu0 0.0
      %685 = vmatpush1.msra.mxu0 0.0
      %686 = vmatprep.subr.mxu0 0.0
      %687 = vmatpush1.msra.mxu0 0.0
      %688 = vmatprep.subr.mxu0 0.0
      %689 = vmatpush1.msra.mxu0 0.0
      %690 = vmatprep.subr.mxu0 0.0
      %691 = vmatpush1.msra.mxu0 0.0
      %692 = vmatprep.subr.mxu0 0.0
      %693 = vmatpush1.msra.mxu0 0.0
      %694 = vmatprep.subr.mxu0 0.0
      %695 = vmatpush1.msra.mxu0 0.0
      %696 = vmatprep.subr.mxu0 0.0
      %697 = vmatpush1.msra.mxu0 0.0
      %698 = vmatprep.subr.mxu0 0.0
      %699 = vmatpush1.msra.mxu0 0.0
      %700 = vmatprep.subr.mxu0 0.0
      %701 = vmatpush1.msra.mxu0 0.0
      %702 = vmatprep.subr.mxu0 0.0
      %703 = vmatpush1.msra.mxu0 0.0
      %704 = vmatprep.subr.mxu0 0.0
      %705 = vmatpush1.msra.mxu0 0.0
      %706 = vmatprep.subr.mxu0 0.0
      %707 = vmatpush1.msra.mxu0 0.0
      %708 = vmatprep.subr.mxu0 0.0
      %709 = vmatpush1.msra.mxu0 0.0
      %710 = vmatprep.subr.mxu0 0.0
      %711 = vmatpush1.msra.mxu0 0.0
      %712 = vmatprep.mubr.f32.mxu0 0.0
      %713 = vmatmul.mubr.f32.gmra.mrb[0].mxu0 %v643
      %v714 = vpop.f32.mrb[0].mxu0
      %v715 = vadd.f32 0.0, %v714
      %v716 = vpop.f32.mrb[0].mxu0
      %v717 = vadd.f32 0.0, %v716
      %718 = vmatprep.mubr.f32.mxu0 0.0
      %719 = vmatmul.mubr.f32.gmra.mrb[0].mxu0 %v646
      %v720 = vpop.f32.mrb[0].mxu0
      %v721 = vadd.f32 0.0, %v720
      %v722 = vpop.f32.mrb[0].mxu0
      %v723 = vadd.f32 0.0, %v722
      %724 = vdwg.mxu0
      %725 = vrot.lane.b32.xlu0 %v273, 16
      %v726 = vpop.permute.xlu0 %725
      %727 = vrot.lane.b32.xlu0 %v274, 16
      %v728 = vpop.permute.xlu0 %727
      %729 = vrot.lane.b32.xlu0 %v275, 16
      %v730 = vpop.permute.xlu0 %729
      %731 = vrot.lane.b32.xlu0 %v276, 16
      %v732 = vpop.permute.xlu0 %731
      %733 = vrot.lane.b32.xlu0 %v277, 16
      %v734 = vpop.permute.xlu0 %733
      %735 = vrot.lane.b32.xlu0 %v278, 16
      %v736 = vpop.permute.xlu0 %735
      %v737 = vsel %vm311, %v726, %v728
      %v738 = vsel %vm311, %v728, %v730
      %v739 = vsel %vm311, %v732, %v734
      %v740 = vsel %vm311, %v734, %v736
      %v746 = vsel %vm311, %v637, 0
      %v749 = vsel %vm311, %v638, 0
      %751 = vmatprep.subr.mxu0 %v738
      %752 = vmatpush1.msra.mxu0 %v737
      %753 = vmatprep.subr.mxu0 %v740
      %754 = vmatpush1.msra.mxu0 %v739
      %755 = vmatprep.subr.mxu0 0.0
      %756 = vmatpush1.msra.mxu0 0.0
      %757 = vmatprep.subr.mxu0 0.0
      %758 = vmatpush1.msra.mxu0 0.0
      %759 = vmatprep.subr.mxu0 0.0
      %760 = vmatpush1.msra.mxu0 0.0
      %761 = vmatprep.subr.mxu0 0.0
      %762 = vmatpush1.msra.mxu0 0.0
      %763 = vmatprep.subr.mxu0 0.0
      %764 = vmatpush1.msra.mxu0 0.0
      %765 = vmatprep.subr.mxu0 0.0
      %766 = vmatpush1.msra.mxu0 0.0
      %767 = vmatprep.subr.mxu0 0.0
      %768 = vmatpush1.msra.mxu0 0.0
      %769 = vmatprep.subr.mxu0 0.0
      %770 = vmatpush1.msra.mxu0 0.0
      %771 = vmatprep.subr.mxu0 0.0
      %772 = vmatpush1.msra.mxu0 0.0
      %773 = vmatprep.subr.mxu0 0.0
      %774 = vmatpush1.msra.mxu0 0.0
      %775 = vmatprep.subr.mxu0 0.0
      %776 = vmatpush1.msra.mxu0 0.0
      %777 = vmatprep.subr.mxu0 0.0
      %778 = vmatpush1.msra.mxu0 0.0
      %779 = vmatprep.subr.mxu0 0.0
      %780 = vmatpush1.msra.mxu0 0.0
      %781 = vmatprep.subr.mxu0 0.0
      %782 = vmatpush1.msra.mxu0 0.0
      %783 = vmatprep.subr.mxu0 0.0
      %784 = vmatpush1.msra.mxu0 0.0
      %785 = vmatprep.subr.mxu0 0.0
      %786 = vmatpush1.msra.mxu0 0.0
      %787 = vmatprep.subr.mxu0 0.0
      %788 = vmatpush1.msra.mxu0 0.0
      %789 = vmatprep.subr.mxu0 0.0
      %790 = vmatpush1.msra.mxu0 0.0
      %791 = vmatprep.subr.mxu0 0.0
      %792 = vmatpush1.msra.mxu0 0.0
      %793 = vmatprep.subr.mxu0 0.0
      %794 = vmatpush1.msra.mxu0 0.0
      %795 = vmatprep.subr.mxu0 0.0
      %796 = vmatpush1.msra.mxu0 0.0
      %797 = vmatprep.subr.mxu0 0.0
      %798 = vmatpush1.msra.mxu0 0.0
      %799 = vmatprep.subr.mxu0 0.0
      %800 = vmatpush1.msra.mxu0 0.0
      %801 = vmatprep.subr.mxu0 0.0
      %802 = vmatpush1.msra.mxu0 0.0
      %803 = vmatprep.subr.mxu0 0.0
      %804 = vmatpush1.msra.mxu0 0.0
      %805 = vmatprep.subr.mxu0 0.0
      %806 = vmatpush1.msra.mxu0 0.0
      %807 = vmatprep.subr.mxu0 0.0
      %808 = vmatpush1.msra.mxu0 0.0
      %809 = vmatprep.subr.mxu0 0.0
      %810 = vmatpush1.msra.mxu0 0.0
      %811 = vmatprep.subr.mxu0 0.0
      %812 = vmatpush1.msra.mxu0 0.0
      %813 = vmatprep.subr.mxu0 0.0
      %814 = vmatpush1.msra.mxu0 0.0
      %815 = vmatprep.mubr.f32.mxu0 0.0
      %816 = vmatmul.mubr.f32.gmra.mrb[0].mxu0 %v746
      %v817 = vpop.f32.mrb[0].mxu0
      %v818 = vadd.f32 %v715, %v817
      %v819 = vpop.f32.mrb[0].mxu0
      %v820 = vadd.f32 %v717, %v819
      %821 = vmatprep.mubr.f32.mxu0 0.0
      %822 = vmatmul.mubr.f32.gmra.mrb[0].mxu0 %v749
      %v823 = vpop.f32.mrb[0].mxu0
      %v824 = vadd.f32 %v721, %v823
      %v825 = vpop.f32.mrb[0].mxu0
      %v826 = vadd.f32 %v723, %v825
      %827 = vdwg.mxu0
      %s828 = scalar_lea.vmem %s3, 112
      %v829 = vld [vmem:[%s828] sm:$0xff]
      %v830 = vld [vmem:[%s828 + $0x8] sm:$0xf]
      %831 = vrot.lane.b32.xlu0 %v499, 112
      %v832 = vpop.permute.xlu0 %831
      %833 = vrot.lane.b32.xlu0 %v500, 112
      %v834 = vpop.permute.xlu0 %833
      %835 = vrot.lane.b32.xlu0 %v501, 112
      %v836 = vpop.permute.xlu0 %835
      %837 = vrot.lane.b32.xlu0 %v502, 112
      %v838 = vpop.permute.xlu0 %837
      %839 = vrot.lane.b32.xlu0 %v503, 112
      %v840 = vpop.permute.xlu0 %839
      %841 = vrot.lane.b32.xlu0 %v504, 112
      %v842 = vpop.permute.xlu0 %841
      %vm843 = vcmask 916480
      %v844 = vsel %vm843, %v832, %v834
      %v845 = vsel %vm843, %v834, %v836
      %v846 = vsel %vm843, %v838, %v840
      %v847 = vsel %vm843, %v840, %v842
      %v853 = vsel %vm311, %v829, 0
      %v856 = vsel %vm311, %v830, 0
      %858 = vmatprep.subr.mxu0 %v845
      %859 = vmatpush1.msra.mxu0 %v844
      %860 = vmatprep.subr.mxu0 %v847
      %861 = vmatpush1.msra.mxu0 %v846
      %862 = vmatprep.subr.mxu0 0.0
      %863 = vmatpush1.msra.mxu0 0.0
      %864 = vmatprep.subr.mxu0 0.0
      %865 = vmatpush1.msra.mxu0 0.0
      %866 = vmatprep.subr.mxu0 0.0
      %867 = vmatpush1.msra.mxu0 0.0
      %868 = vmatprep.subr.mxu0 0.0
      %869 = vmatpush1.msra.mxu0 0.0
      %870 = vmatprep.subr.mxu0 0.0
      %871 = vmatpush1.msra.mxu0 0.0
      %872 = vmatprep.subr.mxu0 0.0
      %873 = vmatpush1.msra.mxu0 0.0
      %874 = vmatprep.subr.mxu0 0.0
      %875 = vmatpush1.msra.mxu0 0.0
      %876 = vmatprep.subr.mxu0 0.0
      %877 = vmatpush1.msra.mxu0 0.0
      %878 = vmatprep.subr.mxu0 0.0
      %879 = vmatpush1.msra.mxu0 0.0
      %880 = vmatprep.subr.mxu0 0.0
      %881 = vmatpush1.msra.mxu0 0.0
      %882 = vmatprep.subr.mxu0 0.0
      %883 = vmatpush1.msra.mxu0 0.0
      %884 = vmatprep.subr.mxu0 0.0
      %885 = vmatpush1.msra.mxu0 0.0
      %886 = vmatprep.subr.mxu0 0.0
      %887 = vmatpush1.msra.mxu0 0.0
      %888 = vmatprep.subr.mxu0 0.0
      %889 = vmatpush1.msra.mxu0 0.0
      %890 = vmatprep.subr.mxu0 0.0
      %891 = vmatpush1.msra.mxu0 0.0
      %892 = vmatprep.subr.mxu0 0.0
      %893 = vmatpush1.msra.mxu0 0.0
      %894 = vmatprep.subr.mxu0 0.0
      %895 = vmatpush1.msra.mxu0 0.0
      %896 = vmatprep.subr.mxu0 0.0
      %897 = vmatpush1.msra.mxu0 0.0
      %898 = vmatprep.subr.mxu0 0.0
      %899 = vmatpush1.msra.mxu0 0.0
      %900 = vmatprep.subr.mxu0 0.0
      %901 = vmatpush1.msra.mxu0 0.0
      %902 = vmatprep.subr.mxu0 0.0
      %903 = vmatpush1.msra.mxu0 0.0
      %904 = vmatprep.subr.mxu0 0.0
      %905 = vmatpush1.msra.mxu0 0.0
      %906 = vmatprep.subr.mxu0 0.0
      %907 = vmatpush1.msra.mxu0 0.0
      %908 = vmatprep.subr.mxu0 0.0
      %909 = vmatpush1.msra.mxu0 0.0
      %910 = vmatprep.subr.mxu0 0.0
      %911 = vmatpush1.msra.mxu0 0.0
      %912 = vmatprep.subr.mxu0 0.0
      %913 = vmatpush1.msra.mxu0 0.0
      %914 = vmatprep.subr.mxu0 0.0
      %915 = vmatpush1.msra.mxu0 0.0
      %916 = vmatprep.subr.mxu0 0.0
      %917 = vmatpush1.msra.mxu0 0.0
      %918 = vmatprep.subr.mxu0 0.0
      %919 = vmatpush1.msra.mxu0 0.0
      %920 = vmatprep.subr.mxu0 0.0
      %921 = vmatpush1.msra.mxu0 0.0
      %922 = vmatprep.mubr.f32.mxu0 0.0
      %923 = vmatmul.mubr.f32.gmra.mrb[0].mxu0 %v853
      %v924 = vpop.f32.mrb[0].mxu0
      %v925 = vadd.f32 0.0, %v924
      %v926 = vpop.f32.mrb[0].mxu0
      %v927 = vadd.f32 0.0, %v926
      %928 = vmatprep.mubr.f32.mxu0 0.0
      %929 = vmatmul.mubr.f32.gmra.mrb[0].mxu0 %v856
      %v930 = vpop.f32.mrb[0].mxu0
      %v931 = vadd.f32 0.0, %v930
      %v932 = vpop.f32.mrb[0].mxu0
      %v933 = vadd.f32 0.0, %v932
      %934 = vdwg.mxu0
      %v935 = vadd.f32 %v818, %v925
      %v936 = vadd.f32 %v820, %v927
      %v937 = vadd.f32 %v824, %v931
      %v938 = vadd.f32 %v826, %v933
      %v939 = vadd.f32 %v632, %v935
      %v940 = vadd.f32 %v633, %v936
      %v941 = vadd.f32 %v634, %v937
      %v942 = vadd.f32 %v635, %v938
      %s943 = scalar_lea.vmem %s3, 32
      %v944 = vld [vmem:[%s943] sm:$0xff]
      %v945 = vld [vmem:[%s943 + $0x8] sm:$0xf]
      %s946 = scalar_lea.vmem %s3, 80
      %v947 = vld [vmem:[%s946] sm:$0xff]
      %v948 = vld [vmem:[%s946 + $0x8] sm:$0xf]
      %949 = vrot.lane.b32.xlu0 %v499, 127
      %v950 = vpop.permute.xlu0 %949
      %951 = vrot.lane.b32.xlu0 %v500, 127
      %v952 = vpop.permute.xlu0 %951
      %953 = vrot.lane.b32.xlu0 %v501, 127
      %v954 = vpop.permute.xlu0 %953
      %955 = vrot.lane.b32.xlu0 %v502, 127
      %v956 = vpop.permute.xlu0 %955
      %957 = vrot.lane.b32.xlu0 %v503, 127
      %v958 = vpop.permute.xlu0 %957
      %959 = vrot.lane.b32.xlu0 %v504, 127
      %v960 = vpop.permute.xlu0 %959
      %vm961 = vcmask 1039360
      %v962 = vsel %vm961, %v950, %v952
      %v963 = vsel %vm961, %v952, %v954
      %v964 = vsel %vm961, %v956, %v958
      %v965 = vsel %vm961, %v958, %v960
      %v971 = vsel %vm311, %v947, 0
      %v974 = vsel %vm311, %v948, 0
      %976 = vmatprep.subr.mxu0 %v963
      %977 = vmatpush1.msra.mxu0 %v962
      %978 = vmatprep.subr.mxu0 %v965
      %979 = vmatpush1.msra.mxu0 %v964
      %980 = vmatprep.subr.mxu0 0.0
      %981 = vmatpush1.msra.mxu0 0.0
      %982 = vmatprep.subr.mxu0 0.0
      %983 = vmatpush1.msra.mxu0 0.0
      %984 = vmatprep.subr.mxu0 0.0
      %985 = vmatpush1.msra.mxu0 0.0
      %986 = vmatprep.subr.mxu0 0.0
      %987 = vmatpush1.msra.mxu0 0.0
      %988 = vmatprep.subr.mxu0 0.0
      %989 = vmatpush1.msra.mxu0 0.0
      %990 = vmatprep.subr.mxu0 0.0
      %991 = vmatpush1.msra.mxu0 0.0
      %992 = vmatprep.subr.mxu0 0.0
      %993 = vmatpush1.msra.mxu0 0.0
      %994 = vmatprep.subr.mxu0 0.0
      %995 = vmatpush1.msra.mxu0 0.0
      %996 = vmatprep.subr.mxu0 0.0
      %997 = vmatpush1.msra.mxu0 0.0
      %998 = vmatprep.subr.mxu0 0.0
      %999 = vmatpush1.msra.mxu0 0.0
      %1000 = vmatprep.subr.mxu0 0.0
      %1001 = vmatpush1.msra.mxu0 0.0
      %1002 = vmatprep.subr.mxu0 0.0
      %1003 = vmatpush1.msra.mxu0 0.0
      %1004 = vmatprep.subr.mxu0 0.0
      %1005 = vmatpush1.msra.mxu0 0.0
      %1006 = vmatprep.subr.mxu0 0.0
      %1007 = vmatpush1.msra.mxu0 0.0
      %1008 = vmatprep.subr.mxu0 0.0
      %1009 = vmatpush1.msra.mxu0 0.0
      %1010 = vmatprep.subr.mxu0 0.0
      %1011 = vmatpush1.msra.mxu0 0.0
      %1012 = vmatprep.subr.mxu0 0.0
      %1013 = vmatpush1.msra.mxu0 0.0
      %1014 = vmatprep.subr.mxu0 0.0
      %1015 = vmatpush1.msra.mxu0 0.0
      %1016 = vmatprep.subr.mxu0 0.0
      %1017 = vmatpush1.msra.mxu0 0.0
      %1018 = vmatprep.subr.mxu0 0.0
      %1019 = vmatpush1.msra.mxu0 0.0
      %1020 = vmatprep.subr.mxu0 0.0
      %1021 = vmatpush1.msra.mxu0 0.0
      %1022 = vmatprep.subr.mxu0 0.0
      %1023 = vmatpush1.msra.mxu0 0.0
      %1024 = vmatprep.subr.mxu0 0.0
      %1025 = vmatpush1.msra.mxu0 0.0
      %1026 = vmatprep.subr.mxu0 0.0
      %1027 = vmatpush1.msra.mxu0 0.0
      %1028 = vmatprep.subr.mxu0 0.0
      %1029 = vmatpush1.msra.mxu0 0.0
      %1030 = vmatprep.subr.mxu0 0.0
      %1031 = vmatpush1.msra.mxu0 0.0
      %1032 = vmatprep.subr.mxu0 0.0
      %1033 = vmatpush1.msra.mxu0 0.0
      %1034 = vmatprep.subr.mxu0 0.0
      %1035 = vmatpush1.msra.mxu0 0.0
      %1036 = vmatprep.subr.mxu0 0.0
      %1037 = vmatpush1.msra.mxu0 0.0
      %1038 = vmatprep.subr.mxu0 0.0
      %1039 = vmatpush1.msra.mxu0 0.0
      %1040 = vmatprep.mubr.f32.mxu0 0.0
      %1041 = vmatmul.mubr.f32.gmra.mrb[0].mxu0 %v971
      %v1042 = vpop.f32.mrb[0].mxu0
      %v1043 = vadd.f32 0.0, %v1042
      %v1044 = vpop.f32.mrb[0].mxu0
      %v1045 = vadd.f32 0.0, %v1044
      %1046 = vmatprep.mubr.f32.mxu0 0.0
      %1047 = vmatmul.mubr.f32.gmra.mrb[0].mxu0 %v974
      %v1048 = vpop.f32.mrb[0].mxu0
      %v1049 = vadd.f32 0.0, %v1048
      %v1050 = vpop.f32.mrb[0].mxu0
      %v1051 = vadd.f32 0.0, %v1050
      %1052 = vdwg.mxu0
      %1053 = vrot.lane.b32.xlu0 %v273, 15
      %v1054 = vpop.permute.xlu0 %1053
      %1055 = vrot.lane.b32.xlu0 %v274, 15
      %v1056 = vpop.permute.xlu0 %1055
      %1057 = vrot.lane.b32.xlu0 %v275, 15
      %v1058 = vpop.permute.xlu0 %1057
      %1059 = vrot.lane.b32.xlu0 %v276, 15
      %v1060 = vpop.permute.xlu0 %1059
      %1061 = vrot.lane.b32.xlu0 %v277, 15
      %v1062 = vpop.permute.xlu0 %1061
      %1063 = vrot.lane.b32.xlu0 %v278, 15
      %v1064 = vpop.permute.xlu0 %1063
      %vm1065 = vcmask 121856
      %v1066 = vsel %vm1065, %v1054, %v1056
      %v1067 = vsel %vm1065, %v1056, %v1058
      %v1068 = vsel %vm1065, %v1060, %v1062
      %v1069 = vsel %vm1065, %v1062, %v1064
      %v1075 = vsel %vm311, %v944, 0
      %v1078 = vsel %vm311, %v945, 0
      %1080 = vmatprep.subr.mxu0 %v1067
      %1081 = vmatpush1.msra.mxu0 %v1066
      %1082 = vmatprep.subr.mxu0 %v1069
      %1083 = vmatpush1.msra.mxu0 %v1068
      %1084 = vmatprep.subr.mxu0 0.0
      %1085 = vmatpush1.msra.mxu0 0.0
      %1086 = vmatprep.subr.mxu0 0.0
      %1087 = vmatpush1.msra.mxu0 0.0
      %1088 = vmatprep.subr.mxu0 0.0
      %1089 = vmatpush1.msra.mxu0 0.0
      %1090 = vmatprep.subr.mxu0 0.0
      %1091 = vmatpush1.msra.mxu0 0.0
      %1092 = vmatprep.subr.mxu0 0.0
      %1093 = vmatpush1.msra.mxu0 0.0
      %1094 = vmatprep.subr.mxu0 0.0
      %1095 = vmatpush1.msra.mxu0 0.0
      %1096 = vmatprep.subr.mxu0 0.0
      %1097 = vmatpush1.msra.mxu0 0.0
      %1098 = vmatprep.subr.mxu0 0.0
      %1099 = vmatpush1.msra.mxu0 0.0
      %1100 = vmatprep.subr.mxu0 0.0
      %1101 = vmatpush1.msra.mxu0 0.0
      %1102 = vmatprep.subr.mxu0 0.0
      %1103 = vmatpush1.msra.mxu0 0.0
      %1104 = vmatprep.subr.mxu0 0.0
      %1105 = vmatpush1.msra.mxu0 0.0
      %1106 = vmatprep.subr.mxu0 0.0
      %1107 = vmatpush1.msra.mxu0 0.0
      %1108 = vmatprep.subr.mxu0 0.0
      %1109 = vmatpush1.msra.mxu0 0.0
      %1110 = vmatprep.subr.mxu0 0.0
      %1111 = vmatpush1.msra.mxu0 0.0
      %1112 = vmatprep.subr.mxu0 0.0
      %1113 = vmatpush1.msra.mxu0 0.0
      %1114 = vmatprep.subr.mxu0 0.0
      %1115 = vmatpush1.msra.mxu0 0.0
      %1116 = vmatprep.subr.mxu0 0.0
      %1117 = vmatpush1.msra.mxu0 0.0
      %1118 = vmatprep.subr.mxu0 0.0
      %1119 = vmatpush1.msra.mxu0 0.0
      %1120 = vmatprep.subr.mxu0 0.0
      %1121 = vmatpush1.msra.mxu0 0.0
      %1122 = vmatprep.subr.mxu0 0.0
      %1123 = vmatpush1.msra.mxu0 0.0
      %1124 = vmatprep.subr.mxu0 0.0
      %1125 = vmatpush1.msra.mxu0 0.0
      %1126 = vmatprep.subr.mxu0 0.0
      %1127 = vmatpush1.msra.mxu0 0.0
      %1128 = vmatprep.subr.mxu0 0.0
      %1129 = vmatpush1.msra.mxu0 0.0
      %1130 = vmatprep.subr.mxu0 0.0
      %1131 = vmatpush1.msra.mxu0 0.0
      %1132 = vmatprep.subr.mxu0 0.0
      %1133 = vmatpush1.msra.mxu0 0.0
      %1134 = vmatprep.subr.mxu0 0.0
      %1135 = vmatpush1.msra.mxu0 0.0
      %1136 = vmatprep.subr.mxu0 0.0
      %1137 = vmatpush1.msra.mxu0 0.0
      %1138 = vmatprep.subr.mxu0 0.0
      %1139 = vmatpush1.msra.mxu0 0.0
      %1140 = vmatprep.subr.mxu0 0.0
      %1141 = vmatpush1.msra.mxu0 0.0
      %1142 = vmatprep.subr.mxu0 0.0
      %1143 = vmatpush1.msra.mxu0 0.0
      %1144 = vmatprep.mubr.f32.mxu0 0.0
      %1145 = vmatmul.mubr.f32.gmra.mrb[0].mxu0 %v1075
      %v1146 = vpop.f32.mrb[0].mxu0
      %v1147 = vadd.f32 %v1043, %v1146
      %v1148 = vpop.f32.mrb[0].mxu0
      %v1149 = vadd.f32 %v1045, %v1148
      %1150 = vmatprep.mubr.f32.mxu0 0.0
      %1151 = vmatmul.mubr.f32.gmra.mrb[0].mxu0 %v1078
      %v1152 = vpop.f32.mrb[0].mxu0
      %v1153 = vadd.f32 %v1049, %v1152
      %v1154 = vpop.f32.mrb[0].mxu0
      %v1155 = vadd.f32 %v1051, %v1154
      %1156 = vdwg.mxu0
      %s1157 = scalar_lea.vmem %s3, 128
      %v1158 = vld [vmem:[%s1157] sm:$0xff]
      %v1159 = vld [vmem:[%s1157 + $0x8] sm:$0xf]
      %1160 = vrot.lane.b32.xlu0 %v499, 111
      %v1161 = vpop.permute.xlu0 %1160
      %1162 = vrot.lane.b32.xlu0 %v500, 111
      %v1163 = vpop.permute.xlu0 %1162
      %1164 = vrot.lane.b32.xlu0 %v501, 111
      %v1165 = vpop.permute.xlu0 %1164
      %1166 = vrot.lane.b32.xlu0 %v502, 111
      %v1167 = vpop.permute.xlu0 %1166
      %1168 = vrot.lane.b32.xlu0 %v503, 111
      %v1169 = vpop.permute.xlu0 %1168
      %1170 = vrot.lane.b32.xlu0 %v504, 111
      %v1171 = vpop.permute.xlu0 %1170
      %vm1172 = vcmask 908288
      %v1173 = vsel %vm1172, %v1161, %v1163
      %v1174 = vsel %vm1172, %v1163, %v1165
      %v1175 = vsel %vm1172, %v1167, %v1169
      %v1176 = vsel %vm1172, %v1169, %v1171
      %v1182 = vsel %vm311, %v1158, 0
      %v1185 = vsel %vm311, %v1159, 0
      %1187 = vmatprep.subr.mxu0 %v1174
      %1188 = vmatpush1.msra.mxu0 %v1173
      %1189 = vmatprep.subr.mxu0 %v1176
      %1190 = vmatpush1.msra.mxu0 %v1175
      %1191 = vmatprep.subr.mxu0 0.0
      %1192 = vmatpush1.msra.mxu0 0.0
      %1193 = vmatprep.subr.mxu0 0.0
      %1194 = vmatpush1.msra.mxu0 0.0
      %1195 = vmatprep.subr.mxu0 0.0
      %1196 = vmatpush1.msra.mxu0 0.0
      %1197 = vmatprep.subr.mxu0 0.0
      %1198 = vmatpush1.msra.mxu0 0.0
      %1199 = vmatprep.subr.mxu0 0.0
      %1200 = vmatpush1.msra.mxu0 0.0
      %1201 = vmatprep.subr.mxu0 0.0
      %1202 = vmatpush1.msra.mxu0 0.0
      %1203 = vmatprep.subr.mxu0 0.0
      %1204 = vmatpush1.msra.mxu0 0.0
      %1205 = vmatprep.subr.mxu0 0.0
      %1206 = vmatpush1.msra.mxu0 0.0
      %1207 = vmatprep.subr.mxu0 0.0
      %1208 = vmatpush1.msra.mxu0 0.0
      %1209 = vmatprep.subr.mxu0 0.0
      %1210 = vmatpush1.msra.mxu0 0.0
      %1211 = vmatprep.subr.mxu0 0.0
      %1212 = vmatpush1.msra.mxu0 0.0
      %1213 = vmatprep.subr.mxu0 0.0
      %1214 = vmatpush1.msra.mxu0 0.0
      %1215 = vmatprep.subr.mxu0 0.0
      %1216 = vmatpush1.msra.mxu0 0.0
      %1217 = vmatprep.subr.mxu0 0.0
      %1218 = vmatpush1.msra.mxu0 0.0
      %1219 = vmatprep.subr.mxu0 0.0
      %1220 = vmatpush1.msra.mxu0 0.0
      %1221 = vmatprep.subr.mxu0 0.0
      %1222 = vmatpush1.msra.mxu0 0.0
      %1223 = vmatprep.subr.mxu0 0.0
      %1224 = vmatpush1.msra.mxu0 0.0
      %1225 = vmatprep.subr.mxu0 0.0
      %1226 = vmatpush1.msra.mxu0 0.0
      %1227 = vmatprep.subr.mxu0 0.0
      %1228 = vmatpush1.msra.mxu0 0.0
      %1229 = vmatprep.subr.mxu0 0.0
      %1230 = vmatpush1.msra.mxu0 0.0
      %1231 = vmatprep.subr.mxu0 0.0
      %1232 = vmatpush1.msra.mxu0 0.0
      %1233 = vmatprep.subr.mxu0 0.0
      %1234 = vmatpush1.msra.mxu0 0.0
      %1235 = vmatprep.subr.mxu0 0.0
      %1236 = vmatpush1.msra.mxu0 0.0
      %1237 = vmatprep.subr.mxu0 0.0
      %1238 = vmatpush1.msra.mxu0 0.0
      %1239 = vmatprep.subr.mxu0 0.0
      %1240 = vmatpush1.msra.mxu0 0.0
      %1241 = vmatprep.subr.mxu0 0.0
      %1242 = vmatpush1.msra.mxu0 0.0
      %1243 = vmatprep.subr.mxu0 0.0
      %1244 = vmatpush1.msra.mxu0 0.0
      %1245 = vmatprep.subr.mxu0 0.0
      %1246 = vmatpush1.msra.mxu0 0.0
      %1247 = vmatprep.subr.mxu0 0.0
      %1248 = vmatpush1.msra.mxu0 0.0
      %1249 = vmatprep.subr.mxu0 0.0
      %1250 = vmatpush1.msra.mxu0 0.0
      %1251 = vmatprep.mubr.f32.mxu0 0.0
      %1252 = vmatmul.mubr.f32.gmra.mrb[0].mxu0 %v1182
      %v1253 = vpop.f32.mrb[0].mxu0
      %v1254 = vadd.f32 0.0, %v1253
      %v1255 = vpop.f32.mrb[0].mxu0
      %v1256 = vadd.f32 0.0, %v1255
      %1257 = vmatprep.mubr.f32.mxu0 0.0
      %1258 = vmatmul.mubr.f32.gmra.mrb[0].mxu0 %v1185
      %v1259 = vpop.f32.mrb[0].mxu0
      %v1260 = vadd.f32 0.0, %v1259
      %v1261 = vpop.f32.mrb[0].mxu0
      %v1262 = vadd.f32 0.0, %v1261
      %1263 = vdwg.mxu0
      %v1264 = vadd.f32 %v1147, %v1254
      %v1265 = vadd.f32 %v1149, %v1256
      %v1266 = vadd.f32 %v1153, %v1260
      %v1267 = vadd.f32 %v1155, %v1262
      %vm1268 = vcmp.le.s32.totalorder %v271, 14
      %vm1269 = vcmp.le.s32.totalorder %v272, 14
      %v1270 = vsel %vm1268, 1, 0
      %v1271 = vsel %vm1269, 1, 0
      %vm1272 = vcmp.eq.s32.totalorder %v1270, 1
      %vm1273 = vcmp.eq.s32.totalorder %v1271, 1
      %v1274 = vsel %vm1272, %v1264, 0.0
      %v1275 = vsel %vm1273, %v1265, 0.0
      %v1276 = vsel %vm1272, %v1266, 0.0
      %v1277 = vsel %vm1273, %v1267, 0.0
      %v1278 = vadd.f32 %v939, %v1274
      %v1279 = vadd.f32 %v940, %v1275
      %v1280 = vadd.f32 %v941, %v1276
      %v1281 = vadd.f32 %v942, %v1277
      %1282 = vst [vmem:[%s197] sm:$0xff] %v198
      %1283 = vst [vmem:[%s197 + $0x8] sm:$0xff] %v199
      %1284 = vst [vmem:[%s197 + $0x10] sm:$0xff] %v200
      %1285 = vst [vmem:[%s197 + $0x18] sm:$0xff] %v201
      %1286 = vst [vmem:[%s197 + $0x20] sm:$0xff] %v1278
      %1287 = vst [vmem:[%s197 + $0x28] sm:$0xff] %v1279
      %1288 = vst [vmem:[%s197 + $0x30] sm:$0xf] %v1280
      %1289 = vst [vmem:[%s197 + $0x38] sm:$0xf] %v1281
      %p1290 = scmp.lt.s32.totalorder %s15, 1
      %s1291 = scalar_select %p1290, %s15, 1
      %s1292 = smul.addr %s1291, 8
      %s1293 = smul.addr %s1292, 8
      %s1294 = scalar_lea.vmem %s4, %s1293
      // Predicated region
      $region37: #{single_layer_forward.1} parent=35 // pred_check
        %p1295 = pneg %p122
      $region38: #{single_layer_forward.1} parent=35 // pred_check_branch
        %1297 = sbr.rel (%p1295) target = $region40
      $region39: #{single_layer_forward.1} parent=35 // pred_region
        _
      $region40: #{single_layer_forward.1} parent=35 // pred_fallthru
        _
    $region36: #{single_layer_forward.1} parent=5 // pred_fallthru
      _
    %p1298 = scmp.le.s32.totalorder 2, %s10
    // Predicated region
    $region41: #{single_layer_forward.1} parent=5 // pred_check
      %p1299 = pneg %p1298
    $region42: #{single_layer_forward.1} parent=5 // pred_check_branch
      %1301 = sbr.rel (%p1299) target = $region44
    $region43: #{single_layer_forward.1} parent=5 // pred_region
      %s1302 = ssub.s32 %s10, 2
      // Predicated region
      $region45: #{single_layer_forward.1} parent=43 // pred_check
        %p1303 = pneg %p128
      $region46: #{single_layer_forward.1} parent=43 // pred_check_branch
        %1305 = sbr.rel (%p1303) target = $region48
      $region47: #{single_layer_forward.1} parent=43 // pred_region
        %p1306 = scmp.lt.s32.totalorder %s16, 1
        %s1307 = scalar_select %p1306, %s16, 1
        %s1308 = smul.addr %s1307, 8
        %s1309 = smul.addr %s1308, 8
        %s1310 = scalar_lea.vmem %s4, %s1309
      $region48: #{single_layer_forward.1} parent=43 // pred_fallthru
        _
    $region44: #{single_layer_forward.1} parent=5 // pred_fallthru
      _
  $region6: #{single_layer_forward.1} parent=0 // loop_footer
    %s14 = sadd.s32 1, %s10
  $region7: #{single_layer_forward.1} parent=0 // loop_footer_branch
    %9 = sbr.rel target = $region3
  $region8: #{single_layer_forward.1} parent=0 // loop_exit
    _

</llo_original>
